<compile_context>
chip_gen: v7x
topology: tpu7x:2x2x1
jax: 0.10.0
libtpu: 0.0.40
codegen_flags: <defaults>
</compile_context>

<pallas_src>
import jax
import jax.numpy as jnp
from jax import lax
from jax.experimental import pallas as pl
from jax.experimental.pallas import tpu as pltpu

KSZ = 5          # kernel_size of the two temporal convs
PAD = 2          # padding=2
C1 = 256         # hidden channels of conv1 (hardcoded in the module)
C2 = 128         # hidden channels of conv2 (hardcoded in the module)


def _tcnn_kernel(x_ref, w1_ref, b1_ref, w2_ref, b2_ref, w3_ref, b3_ref,
                 out_ref, xm_ref, h1m_ref, xcol_ref, p1_ref):
    # x_ref   : (BB, T, Cin)        f32   unpadded input block
    # w1_ref  : (Cin, 5*C1)         bf16  conv1 taps side by side (tap k -> cols k*C1:)
    # w2_ref  : (5*C1, C2)          bf16  conv2 taps stacked along K (im2col order)
    # w3_ref  : (1, C2)             f32
    # b1/b2   : (1, C1)/(1, C2)     f32
    # b3_ref  : (1, 1)              f32 SMEM scalar
    # out_ref : (1, 1, R)           f32, R = BB*Tp (halo columns sliced off in wrapper)
    # xm_ref  : (R, Cin)            bf16 scratch, zero-haloed padded input (merged rows)
    # h1m_ref : (R + 2*PAD, C1)     bf16 scratch, zero-haloed padded hidden1
    # xcol_ref: (R, 5*C1)           bf16 scratch, conv2 im2col slab
    # p1_ref  : (R, 5*C1)           f32  scratch, conv1 per-tap matmul results
    BB, T, Cin = x_ref.shape
    Tp = T + 2 * PAD
    R = xm_ref.shape[0]                      # BB * Tp

    zx = jnp.zeros((PAD, Cin), xm_ref.dtype)
    zh = jnp.zeros((PAD, C1), h1m_ref.dtype)

    # Zero only the halo rows (conv zero-padding), every step.  Interior rows
    # are fully overwritten below; halos are never written anywhere else.
    for bb in range(BB):
        base = bb * Tp
        xm_ref[pl.ds(base, PAD), :] = zx
        xm_ref[pl.ds(base + PAD + T, PAD), :] = zx
        h1m_ref[pl.ds(base, PAD), :] = zh
        h1m_ref[pl.ds(base + PAD + T, PAD), :] = zh
    h1m_ref[pl.ds(R, 2 * PAD), :] = jnp.zeros((2 * PAD, C1), h1m_ref.dtype)

    # Stage the f32 input block into the padded bf16 scratch (cast rides along).
    for bb in range(BB):
        xm_ref[pl.ds(bb * Tp + PAD, T), :] = x_ref[bb].astype(xm_ref.dtype)

    # ---- Conv1d(Cin -> C1, k=5, pad=2): one fused MXU matmul over all rows ----
    # p1[r, k*C1:(k+1)*C1] = xm[r] @ W1_k   (f32 accumulation)
    p1_ref[...] = jnp.dot(xm_ref[...], w1_ref[...],
                          preferred_element_type=jnp.float32)

    # Tap shift applied on the narrow f32 result; bias + ReLU, bf16 h1 into the
    # interior of the padded hidden scratch.
    for bb in range(BB):
        base = bb * Tp
        pre = p1_ref[pl.ds(base, T), 0:C1]
        for k in range(1, KSZ):
            pre = pre + p1_ref[pl.ds(base + k, T), k * C1:(k + 1) * C1]
        h1 = jnp.maximum(pre + b1_ref[...], 0.0).astype(h1m_ref.dtype)
        h1m_ref[pl.ds(bb * Tp + PAD, T), :] = h1

    # ---- Conv1d(C1 -> C2, k=5, pad=2): im2col + single K=5*C1 matmul ----
    for k in range(KSZ):
        xcol_ref[:, k * C1:(k + 1) * C1] = h1m_ref[pl.ds(k, R), :]
    pre2 = jnp.dot(xcol_ref[...], w2_ref[...],
                   preferred_element_type=jnp.float32)            # (R, C2) f32
    h2 = jnp.maximum(pre2 + b2_ref[...], 0.0)                     # f32

    # ---- Conv1d(C2 -> 1, k=1): (1,C2) x (C2,R) -> lane-dense (1, R) row ----
    yrow = lax.dot_general(w3_ref[...], h2, (((1,), (1,)), ((), ())),
                           preferred_element_type=jnp.float32)    # (1, R)
    out_ref[...] = (yrow + b3_ref[0, 0]).reshape(1, 1, R)


def _pick_batch_block(B, T, target_rows=256):
    """Largest divisor of B with BB*T ~ target_rows rows per step, while keeping
    the grid length >= 2 (so v7x can shard the parallel axis over its 2 cores).
    Use target_rows=128 on v5e (its MXU M dimension is 128)."""
    bb = min(B, max(1, target_rows // max(T, 1)), max(1, B // 2))
    while B % bb:
        bb -= 1
    return bb


def temporal_cnn_forward(x, params, batch_block=None, target_rows=256):
    """x: (B, T, Cin) float32  ->  (B, T, 1) float32"""
    w1_all, b1, w2_all, b2, w3row, b3 = params
    B, T, Cin = x.shape
    BB = batch_block if batch_block is not None else _pick_batch_block(B, T, target_rows)
    assert B % BB == 0, f"batch_block={BB} must divide batch={B}"
    Tp = T + 2 * PAD
    R = BB * Tp
    grid = (B // BB,)

    out = pl.pallas_call(
        _tcnn_kernel,
        out_shape=jax.ShapeDtypeStruct((B // BB, 1, R), jnp.float32),
        grid_spec=pltpu.PrefetchScalarGridSpec(
            num_scalar_prefetch=0,
            grid=grid,
            in_specs=[
                pl.BlockSpec((BB, T, Cin), lambda b: (b, 0, 0)),     # x (f32, unpadded)
                pl.BlockSpec((Cin, KSZ * C1), lambda b: (0, 0)),     # w1_all bf16
                pl.BlockSpec((1, C1), lambda b: (0, 0)),             # b1 f32
                pl.BlockSpec((KSZ * C1, C2), lambda b: (0, 0)),      # w2_all bf16
                pl.BlockSpec((1, C2), lambda b: (0, 0)),             # b2 f32
                pl.BlockSpec((1, C2), lambda b: (0, 0)),             # w3 row f32
                pl.BlockSpec(memory_space=pltpu.MemorySpace.SMEM),   # b3 scalar
            ],
            out_specs=pl.BlockSpec((1, 1, R), lambda b: (b, 0, 0)),
            scratch_shapes=[
                pltpu.VMEM((R, Cin), jnp.bfloat16),                  # padded input
                pltpu.VMEM((R + 2 * PAD, C1), jnp.bfloat16),         # padded hidden1
                pltpu.VMEM((R, KSZ * C1), jnp.bfloat16),             # conv2 im2col slab
                pltpu.VMEM((R, KSZ * C1), jnp.float32),              # conv1 tap results
            ]),
        compiler_params=pltpu.CompilerParams(
            dimension_semantics=("parallel",),
            vmem_limit_bytes=48 * 1024 * 1024),
    )(x, w1_all, b1, w2_all, b2, w3row, b3)

    # Drop the per-batch halo columns and restore (B, T, 1).
    return out.reshape(B // BB, BB, Tp)[:, :, :T].reshape(B, T, 1)


def make_params(key, input_dim):
    """Deterministic synthetic weights with the same shapes as the nn.Module."""
    k1, k2, k3, k4, k5, k6 = jax.random.split(key, 6)
    # PyTorch layouts: Conv1d weight (out_ch, in_ch, k), bias (out_ch,)
    w1 = jax.random.normal(k1, (C1, input_dim, KSZ), jnp.float32) * 0.02
    b1 = jax.random.normal(k2, (C1,), jnp.float32) * 0.02
    w2 = jax.random.normal(k3, (C2, C1, KSZ), jnp.float32) * 0.02
    b2 = jax.random.normal(k4, (C2,), jnp.float32) * 0.02
    w3 = jax.random.normal(k5, (1, C2, 1), jnp.float32) * 0.02
    b3 = jax.random.normal(k6, (1,), jnp.float32) * 0.02
    # Kernel layouts:
    #   w1_all[cin, k*C1 + co] = w1[co, cin, k]        (Cin, 5*C1)  bf16
    #   w2_all[k*C1 + ci, co]  = w2[co, ci, k]         (5*C1, C2)   bf16
    w1_all = jnp.transpose(w1, (1, 2, 0)).reshape(input_dim, KSZ * C1).astype(jnp.bfloat16)
    w2_all = jnp.transpose(w2, (2, 1, 0)).reshape(KSZ * C1, C2).astype(jnp.bfloat16)
    w3row = w3[:, :, 0].astype(jnp.float32)                       # (1, C2)
    kparams = (w1_all, b1.reshape(1, C1), w2_all, b2.reshape(1, C2),
               w3row, b3.reshape(1, 1))
    return kparams, (w1, b1, w2, b2, w3, b3)


def ref_forward(x, torch_params):
    """Pure-JAX reference mirroring the PyTorch module (NCW convs + permutes),
    with the same bf16 rounding points the kernel uses (bf16 x/w1/w2, bf16 h1,
    f32 accumulation, f32 conv3)."""
    w1, b1, w2, b2, w3, b3 = torch_params
    bf = lambda a: a.astype(jnp.bfloat16).astype(jnp.float32)
    dn = ("NCH", "OIH", "NCH")
    hi = lax.Precision.HIGHEST
    xc = jnp.transpose(bf(x), (0, 2, 1))                          # (B, Cin, T)
    y = lax.conv_general_dilated(xc, bf(w1), (1,), [(PAD, PAD)],
                                 dimension_numbers=dn,
                                 precision=hi) + b1.reshape(1, -1, 1)
    y = bf(jnp.maximum(y, 0.0))          # kernel stores h1 in bf16 scratch
    y = lax.conv_general_dilated(y, bf(w2), (1,), [(PAD, PAD)],
                                 dimension_numbers=dn,
                                 precision=hi) + b2.reshape(1, -1, 1)
    y = jnp.maximum(y, 0.0)
    y = lax.conv_general_dilated(y, w3, (1,), [(0, 0)],
                                 dimension_numbers=dn,
                                 precision=hi) + b3.reshape(1, -1, 1)
    return jnp.transpose(y, (0, 2, 1))                            # (B, T, 1)


if __name__ == "__main__":
    key = jax.random.PRNGKey(0)
    kx, kp = jax.random.split(key)

    B, T, Cin = 2, 16, 64          # small input_dim instead of the default 2048
    x = jax.random.normal(kx, (B, T, Cin), jnp.float32)

    params, torch_params = make_params(kp, Cin)

    out = jax.block_until_ready(temporal_cnn_forward(x, params))
    ref = jax.block_until_ready(ref_forward(x, torch_params))

    assert out.shape == (B, T, 1)
    err = float(jnp.max(jnp.abs(out - ref)))
    assert err < 2e-3, f"max abs err {err}"

    print("KERNEL_OK")
</pallas_src>

<mosaic_0001>
module attributes {stable_mosaic.version = 11 : i64} {
  func.func @_tcnn_kernel(%arg0: i32, %arg1: memref<1x16x64xf32, #tpu.memory_space<vmem>>, %arg2: memref<64x1280xbf16, #tpu.memory_space<vmem>>, %arg3: memref<1x256xf32, #tpu.memory_space<vmem>>, %arg4: memref<1280x128xbf16, #tpu.memory_space<vmem>>, %arg5: memref<1x128xf32, #tpu.memory_space<vmem>>, %arg6: memref<1x128xf32, #tpu.memory_space<vmem>>, %arg7: memref<1x1xf32, #tpu.memory_space<smem>>, %arg8: memref<1x1x20xf32, #tpu.memory_space<vmem>>, %arg9: memref<20x64xbf16, #tpu.memory_space<vmem>>, %arg10: memref<24x256xbf16, #tpu.memory_space<vmem>>, %arg11: memref<20x1280xbf16, #tpu.memory_space<vmem>>, %arg12: memref<20x1280xf32, #tpu.memory_space<vmem>>) attributes {dimension_semantics = [#tpu.dimension_semantics<parallel>], iteration_bounds = array<i64: 2>, scalar_prefetch = 0 : i64, scratch_operands = 4 : i64, tpu.core_type = #tpu.core_type<tc>, window_params = [{transform_indices = @transform_0, window_bounds = array<i64: 1, 16, 64>}, {pipeline_mode = #tpu.pipeline_mode<synchronous>, transform_indices = @transform_1, window_bounds = array<i64: 64, 1280>}, {pipeline_mode = #tpu.pipeline_mode<synchronous>, transform_indices = @transform_2, window_bounds = array<i64: 1, 256>}, {pipeline_mode = #tpu.pipeline_mode<synchronous>, transform_indices = @transform_3, window_bounds = array<i64: 1280, 128>}, {pipeline_mode = #tpu.pipeline_mode<synchronous>, transform_indices = @transform_4, window_bounds = array<i64: 1, 128>}, {pipeline_mode = #tpu.pipeline_mode<synchronous>, transform_indices = @transform_5, window_bounds = array<i64: 1, 128>}, {transform_indices = @transform_6, window_bounds = array<i64: 1, 1>}, {transform_indices = @transform_7, window_bounds = array<i64: 1, 1, 20>}]} {
    %cst = arith.constant 0.000000e+00 : bf16
    %0 = vector.broadcast %cst : bf16 to vector<2x64xbf16>
    %cst_0 = arith.constant 0.000000e+00 : bf16
    %1 = vector.broadcast %cst_0 : bf16 to vector<2x256xbf16>
    %c0 = arith.constant 0 : index
    %c0_1 = arith.constant 0 : index
    %2 = vector.load %arg9[%c0, %c0_1] : memref<20x64xbf16, #tpu.memory_space<vmem>>, vector<2x64xbf16>
    tpu.vector_store %arg9[%c0, %c0_1], %0 {strides = array<i32>} : memref<20x64xbf16, #tpu.memory_space<vmem>>, vector<2x64xbf16>,
    %c18 = arith.constant 18 : index
    %c0_2 = arith.constant 0 : index
    %3 = vector.load %arg9[%c18, %c0_2] : memref<20x64xbf16, #tpu.memory_space<vmem>>, vector<2x64xbf16>
    tpu.vector_store %arg9[%c18, %c0_2], %0 {strides = array<i32>} : memref<20x64xbf16, #tpu.memory_space<vmem>>, vector<2x64xbf16>,
    %c0_3 = arith.constant 0 : index
    %c0_4 = arith.constant 0 : index
    %4 = vector.load %arg10[%c0_3, %c0_4] : memref<24x256xbf16, #tpu.memory_space<vmem>>, vector<2x256xbf16>
    tpu.vector_store %arg10[%c0_3, %c0_4], %1 {strides = array<i32>} : memref<24x256xbf16, #tpu.memory_space<vmem>>, vector<2x256xbf16>,
    %c18_5 = arith.constant 18 : index
    %c0_6 = arith.constant 0 : index
    %5 = vector.load %arg10[%c18_5, %c0_6] : memref<24x256xbf16, #tpu.memory_space<vmem>>, vector<2x256xbf16>
    tpu.vector_store %arg10[%c18_5, %c0_6], %1 {strides = array<i32>} : memref<24x256xbf16, #tpu.memory_space<vmem>>, vector<2x256xbf16>,
    %cst_7 = arith.constant 0.000000e+00 : bf16
    %6 = vector.broadcast %cst_7 : bf16 to vector<4x256xbf16>
    %c20 = arith.constant 20 : index
    %c0_8 = arith.constant 0 : index
    %7 = vector.load %arg10[%c20, %c0_8] : memref<24x256xbf16, #tpu.memory_space<vmem>>, vector<4x256xbf16>
    tpu.vector_store %arg10[%c20, %c0_8], %6 {strides = array<i32>} : memref<24x256xbf16, #tpu.memory_space<vmem>>, vector<4x256xbf16>,
    %c0_9 = arith.constant 0 : index
    %c0_10 = arith.constant 0 : index
    %c0_11 = arith.constant 0 : index
    %8 = vector.load %arg1[%c0_9, %c0_10, %c0_11] : memref<1x16x64xf32, #tpu.memory_space<vmem>>, vector<1x16x64xf32>
    %9 = vector.shape_cast %8 : vector<1x16x64xf32> to vector<16x64xf32>
    %10 = arith.truncf %9 : vector<16x64xf32> to vector<16x64xbf16>
    %c2 = arith.constant 2 : index
    %c0_12 = arith.constant 0 : index
    %11 = vector.load %arg9[%c2, %c0_12] : memref<20x64xbf16, #tpu.memory_space<vmem>>, vector<16x64xbf16>
    tpu.vector_store %arg9[%c2, %c0_12], %10 {strides = array<i32>} : memref<20x64xbf16, #tpu.memory_space<vmem>>, vector<16x64xbf16>,
    %c0_13 = arith.constant 0 : index
    %c0_14 = arith.constant 0 : index
    %12 = vector.load %arg9[%c0_13, %c0_14] : memref<20x64xbf16, #tpu.memory_space<vmem>>, vector<20x64xbf16>
    %c0_15 = arith.constant 0 : index
    %c0_16 = arith.constant 0 : index
    %13 = vector.load %arg2[%c0_15, %c0_16] : memref<64x1280xbf16, #tpu.memory_space<vmem>>, vector<64x1280xbf16>
    %cst_17 = arith.constant dense<0.000000e+00> : vector<20x1280xf32>
    %14 = tpu.matmul %12, %13, %cst_17 {dimension_numbers = #tpu.dot_dimension_numbers<[1], [0], [0], [1], [0, 0, 1, 1], [], []>} : vector<20x64xbf16>, vector<64x1280xbf16>, vector<20x1280xf32> -> vector<20x1280xf32>
    %c0_18 = arith.constant 0 : index
    %c0_19 = arith.constant 0 : index
    %15 = vector.load %arg12[%c0_18, %c0_19] : memref<20x1280xf32, #tpu.memory_space<vmem>>, vector<20x1280xf32>
    tpu.vector_store %arg12[%c0_18, %c0_19], %14 {strides = array<i32>} : memref<20x1280xf32, #tpu.memory_space<vmem>>, vector<20x1280xf32>,
    %c0_20 = arith.constant 0 : index
    %c0_21 = arith.constant 0 : index
    %16 = vector.load %arg12[%c0_20, %c0_21] : memref<20x1280xf32, #tpu.memory_space<vmem>>, vector<16x256xf32>
    %c1 = arith.constant 1 : index
    %c256 = arith.constant 256 : index
    %17 = vector.load %arg12[%c1, %c256] : memref<20x1280xf32, #tpu.memory_space<vmem>>, vector<16x256xf32>
    %18 = arith.addf %16, %17 : vector<16x256xf32>
    %c2_22 = arith.constant 2 : index
    %c512 = arith.constant 512 : index
    %19 = vector.load %arg12[%c2_22, %c512] : memref<20x1280xf32, #tpu.memory_space<vmem>>, vector<16x256xf32>
    %20 = arith.addf %18, %19 : vector<16x256xf32>
    %c3 = arith.constant 3 : index
    %c768 = arith.constant 768 : index
    %21 = vector.load %arg12[%c3, %c768] : memref<20x1280xf32, #tpu.memory_space<vmem>>, vector<16x256xf32>
    %22 = arith.addf %20, %21 : vector<16x256xf32>
    %c4 = arith.constant 4 : index
    %c1024 = arith.constant 1024 : index
    %23 = vector.load %arg12[%c4, %c1024] : memref<20x1280xf32, #tpu.memory_space<vmem>>, vector<16x256xf32>
    %24 = arith.addf %22, %23 : vector<16x256xf32>
    %c0_23 = arith.constant 0 : index
    %c0_24 = arith.constant 0 : index
    %25 = vector.load %arg3[%c0_23, %c0_24] : memref<1x256xf32, #tpu.memory_space<vmem>>, vector<1x256xf32>
    %26 = vector.broadcast %25 : vector<1x256xf32> to vector<16x256xf32>
    %27 = arith.addf %24, %26 : vector<16x256xf32>
    %cst_25 = arith.constant 0.000000e+00 : f32
    %28 = vector.broadcast %cst_25 : f32 to vector<16x256xf32>
    %29 = arith.maximumf %27, %28 : vector<16x256xf32>
    %30 = arith.truncf %29 : vector<16x256xf32> to vector<16x256xbf16>
    %c2_26 = arith.constant 2 : index
    %c0_27 = arith.constant 0 : index
    %31 = vector.load %arg10[%c2_26, %c0_27] : memref<24x256xbf16, #tpu.memory_space<vmem>>, vector<16x256xbf16>
    tpu.vector_store %arg10[%c2_26, %c0_27], %30 {strides = array<i32>} : memref<24x256xbf16, #tpu.memory_space<vmem>>, vector<16x256xbf16>,
    %c0_28 = arith.constant 0 : index
    %c0_29 = arith.constant 0 : index
    %32 = vector.load %arg10[%c0_28, %c0_29] : memref<24x256xbf16, #tpu.memory_space<vmem>>, vector<20x256xbf16>
    %c0_30 = arith.constant 0 : index
    %c0_31 = arith.constant 0 : index
    %33 = vector.load %arg11[%c0_30, %c0_31] : memref<20x1280xbf16, #tpu.memory_space<vmem>>, vector<20x256xbf16>
    tpu.vector_store %arg11[%c0_30, %c0_31], %32 {strides = array<i32>} : memref<20x1280xbf16, #tpu.memory_space<vmem>>, vector<20x256xbf16>,
    %c1_32 = arith.constant 1 : index
    %c0_33 = arith.constant 0 : index
    %34 = vector.load %arg10[%c1_32, %c0_33] : memref<24x256xbf16, #tpu.memory_space<vmem>>, vector<20x256xbf16>
    %c0_34 = arith.constant 0 : index
    %c256_35 = arith.constant 256 : index
    %35 = vector.load %arg11[%c0_34, %c256_35] : memref<20x1280xbf16, #tpu.memory_space<vmem>>, vector<20x256xbf16>
    tpu.vector_store %arg11[%c0_34, %c256_35], %34 {strides = array<i32>} : memref<20x1280xbf16, #tpu.memory_space<vmem>>, vector<20x256xbf16>,
    %c2_36 = arith.constant 2 : index
    %c0_37 = arith.constant 0 : index
    %36 = vector.load %arg10[%c2_36, %c0_37] : memref<24x256xbf16, #tpu.memory_space<vmem>>, vector<20x256xbf16>
    %c0_38 = arith.constant 0 : index
    %c512_39 = arith.constant 512 : index
    %37 = vector.load %arg11[%c0_38, %c512_39] : memref<20x1280xbf16, #tpu.memory_space<vmem>>, vector<20x256xbf16>
    tpu.vector_store %arg11[%c0_38, %c512_39], %36 {strides = array<i32>} : memref<20x1280xbf16, #tpu.memory_space<vmem>>, vector<20x256xbf16>,
    %c3_40 = arith.constant 3 : index
    %c0_41 = arith.constant 0 : index
    %38 = vector.load %arg10[%c3_40, %c0_41] : memref<24x256xbf16, #tpu.memory_space<vmem>>, vector<20x256xbf16>
    %c0_42 = arith.constant 0 : index
    %c768_43 = arith.constant 768 : index
    %39 = vector.load %arg11[%c0_42, %c768_43] : memref<20x1280xbf16, #tpu.memory_space<vmem>>, vector<20x256xbf16>
    tpu.vector_store %arg11[%c0_42, %c768_43], %38 {strides = array<i32>} : memref<20x1280xbf16, #tpu.memory_space<vmem>>, vector<20x256xbf16>,
    %c4_44 = arith.constant 4 : index
    %c0_45 = arith.constant 0 : index
    %40 = vector.load %arg10[%c4_44, %c0_45] : memref<24x256xbf16, #tpu.memory_space<vmem>>, vector<20x256xbf16>
    %c0_46 = arith.constant 0 : index
    %c1024_47 = arith.constant 1024 : index
    %41 = vector.load %arg11[%c0_46, %c1024_47] : memref<20x1280xbf16, #tpu.memory_space<vmem>>, vector<20x256xbf16>
    tpu.vector_store %arg11[%c0_46, %c1024_47], %40 {strides = array<i32>} : memref<20x1280xbf16, #tpu.memory_space<vmem>>, vector<20x256xbf16>,
    %c0_48 = arith.constant 0 : index
    %c0_49 = arith.constant 0 : index
    %42 = vector.load %arg11[%c0_48, %c0_49] : memref<20x1280xbf16, #tpu.memory_space<vmem>>, vector<20x1280xbf16>
    %c0_50 = arith.constant 0 : index
    %c0_51 = arith.constant 0 : index
    %43 = vector.load %arg4[%c0_50, %c0_51] : memref<1280x128xbf16, #tpu.memory_space<vmem>>, vector<1280x128xbf16>
    %cst_52 = arith.constant dense<0.000000e+00> : vector<20x128xf32>
    %44 = tpu.matmul %42, %43, %cst_52 {dimension_numbers = #tpu.dot_dimension_numbers<[1], [0], [0], [1], [0, 0, 1, 1], [], []>} : vector<20x1280xbf16>, vector<1280x128xbf16>, vector<20x128xf32> -> vector<20x128xf32>
    %c0_53 = arith.constant 0 : index
    %c0_54 = arith.constant 0 : index
    %45 = vector.load %arg5[%c0_53, %c0_54] : memref<1x128xf32, #tpu.memory_space<vmem>>, vector<1x128xf32>
    %46 = vector.broadcast %45 : vector<1x128xf32> to vector<20x128xf32>
    %47 = arith.addf %44, %46 : vector<20x128xf32>
    %cst_55 = arith.constant 0.000000e+00 : f32
    %48 = vector.broadcast %cst_55 : f32 to vector<20x128xf32>
    %49 = arith.maximumf %47, %48 : vector<20x128xf32>
    %c0_56 = arith.constant 0 : index
    %c0_57 = arith.constant 0 : index
    %50 = vector.load %arg6[%c0_56, %c0_57] : memref<1x128xf32, #tpu.memory_space<vmem>>, vector<1x128xf32>
    %cst_58 = arith.constant dense<0.000000e+00> : vector<1x20xf32>
    %51 = tpu.matmul %50, %49, %cst_58 {dimension_numbers = #tpu.dot_dimension_numbers<[1], [1], [0], [0], [0, 0, 1, 0], [], []>} : vector<1x128xf32>, vector<20x128xf32>, vector<1x20xf32> -> vector<1x20xf32>
    %c0_59 = arith.constant 0 : index
    %c0_60 = arith.constant 0 : index
    %52 = memref.load %arg7[%c0_59, %c0_60] : memref<1x1xf32, #tpu.memory_space<smem>>
    %53 = vector.broadcast %52 : f32 to vector<1x20xf32>
    %54 = arith.addf %51, %53 : vector<1x20xf32>
    %55 = vector.shape_cast %54 : vector<1x20xf32> to vector<1x1x20xf32>
    %c0_61 = arith.constant 0 : index
    %c0_62 = arith.constant 0 : index
    %c0_63 = arith.constant 0 : index
    %56 = vector.load %arg8[%c0_61, %c0_62, %c0_63] : memref<1x1x20xf32, #tpu.memory_space<vmem>>, vector<1x1x20xf32>
    tpu.vector_store %arg8[%c0_61, %c0_62, %c0_63], %55 {strides = array<i32>} : memref<1x1x20xf32, #tpu.memory_space<vmem>>, vector<1x1x20xf32>,
    return
  }
  func.func @transform_0(%arg0: i32) -> (i32, i32, i32) {
    %c0_i32 = arith.constant 0 : i32
    %c0_i32_0 = arith.constant 0 : i32
    %c0_i32_1 = arith.constant 0 : i32
    return %arg0, %c0_i32, %c0_i32_0 : i32, i32, i32
  }
  func.func @transform_1(%arg0: i32) -> (i32, i32) {
    %c0_i32 = arith.constant 0 : i32
    %c0_i32_0 = arith.constant 0 : i32
    %c0_i32_1 = arith.constant 0 : i32
    return %c0_i32, %c0_i32_0 : i32, i32
  }
  func.func @transform_2(%arg0: i32) -> (i32, i32) {
    %c0_i32 = arith.constant 0 : i32
    %c0_i32_0 = arith.constant 0 : i32
    %c0_i32_1 = arith.constant 0 : i32
    return %c0_i32, %c0_i32_0 : i32, i32
  }
  func.func @transform_3(%arg0: i32) -> (i32, i32) {
    %c0_i32 = arith.constant 0 : i32
    %c0_i32_0 = arith.constant 0 : i32
    %c0_i32_1 = arith.constant 0 : i32
    return %c0_i32, %c0_i32_0 : i32, i32
  }
  func.func @transform_4(%arg0: i32) -> (i32, i32) {
    %c0_i32 = arith.constant 0 : i32
    %c0_i32_0 = arith.constant 0 : i32
    %c0_i32_1 = arith.constant 0 : i32
    return %c0_i32, %c0_i32_0 : i32, i32
  }
  func.func @transform_5(%arg0: i32) -> (i32, i32) {
    %c0_i32 = arith.constant 0 : i32
    %c0_i32_0 = arith.constant 0 : i32
    %c0_i32_1 = arith.constant 0 : i32
    return %c0_i32, %c0_i32_0 : i32, i32
  }
  func.func @transform_6(%arg0: i32) -> (i32, i32) {
    %c0_i32 = arith.constant 0 : i32
    %c0_i32_0 = arith.constant 0 : i32
    %c0_i32_1 = arith.constant 0 : i32
    return %c0_i32, %c0_i32_0 : i32, i32
  }
  func.func @transform_7(%arg0: i32) -> (i32, i32, i32) {
    %c0_i32 = arith.constant 0 : i32
    %c0_i32_0 = arith.constant 0 : i32
    %c0_i32_1 = arith.constant 0 : i32
    return %arg0, %c0_i32, %c0_i32_0 : i32, i32, i32
  }
}

</mosaic_0001>

<llo_original>
// kernel: tpu_custom_call.1
$region0: #{tpu_custom_call.1}
  #allocation0 [shape = 'u32[]', space=smem, size = 0x4, offset = 0x4, fixed_abs, tag = 'smem constant byte address 0x4 - core index']
  #allocation1 [shape = 'u32[144,128]{1,0:T(1,128)}', space=vmem, size = 0x12000, scoped, tag = 'internal scratch']
  #allocation2 [shape = 'bf16[20,64]{1,0:T(8,128)(2,1)}', space=vmem, size = 0x1800, scoped, tag = 'scratch operand']
  #allocation3 [shape = 'bf16[24,256]{1,0:T(8,128)(2,1)}', space=vmem, size = 0x3000, scoped, tag = 'scratch operand']
  #allocation4 [shape = 'bf16[20,1280]{1,0:T(8,128)(2,1)}', space=vmem, size = 0xf000, scoped, tag = 'scratch operand']
  #allocation5 [shape = 'f32[20,1280]{1,0:T(8,128)}', space=vmem, size = 0x1e000, scoped, tag = 'scratch operand']
  #allocation6 [shape = 'f32[1,1]{1,0:T(1,128)S(6)}', space=smem, size = 0x200, scoped, tag = 'scoped memory for tpu_custom_call.1']
  %s0 = inlined_call_operand.hbm [shape: f32[2,16,64], index: 0, kind: input, shape index: {}]
  %s1 = inlined_call_operand.hbm [shape: bf16[64,1280], index: 1, kind: input, shape index: {}]
  %s2 = inlined_call_operand.vmem [shape: f32[1,256], index: 2, kind: input, shape index: {}]
  %s3 = inlined_call_operand.hbm [shape: bf16[1280,128], index: 3, kind: input, shape index: {}]
  %s4 = inlined_call_operand.vmem [shape: f32[1,128], index: 4, kind: input, shape index: {}]
  %s5 = inlined_call_operand.vmem [shape: f32[1,128], index: 5, kind: input, shape index: {}]
  %s6 = inlined_call_operand.<no memory space> [shape: f32[1,1], index: 6, kind: input, shape index: {}]
  %s7 = inlined_call_operand.hbm [shape: f32[2,1,20], index: 7, kind: output, shape index: {}]
  %s8 = sld [smem:[#allocation0]]
  $region73: #{tpu_custom_call.1} parent=0
    _
  %s10 = ssub.s32 1, %s8
  %s11 = scalar_select 0, %s10, %s8
  %12 = sst [smem:[#allocation6]] %s6
  $region1: #{tpu_custom_call.1} parent=0
    #allocation7 [shape = 'u8[16384]{0}', space=vmem, size = 0x4000, scoped, tag = 'input window, operand 0']
    #allocation8 [shape = 's32[2]{0}', space=sflag, size = 0x8, scoped, tag = 'scoped memory for tpu_custom_call.1']
    #allocation9 [shape = 's32[2]{0}', space=sflag, size = 0x8, scoped, tag = 'scoped memory for tpu_custom_call.1']
    #allocation10 [shape = 'u8[163840]{0}', space=vmem, size = 0x28000, scoped, tag = 'input window, operand 1, single buffered']
    #allocation11 [shape = 's32[1]{0}', space=sflag, size = 0x4, scoped, tag = 'scoped memory for tpu_custom_call.1']
    #allocation12 [shape = 'u8[327680]{0}', space=vmem, size = 0x50000, scoped, tag = 'input window, operand 3, single buffered']
    #allocation13 [shape = 'u8[1024]{0}', space=vmem, size = 0x400, scoped, tag = 'output window, operand 0']
    %13 = vsyncpa [#allocation8], 0
    %s14 = scalar_lea.sflag [#allocation8], 1
    %15 = vsyncpa %s14, 0
    %16 = vsyncpa [#allocation11], 0
    %17 = vsyncpa [#allocation9], 0
    %s18 = scalar_lea.sflag [#allocation9], 1
    %19 = vsyncpa %s18, 0
    loop: start=0, step=1, limit=4
    $region2: #{tpu_custom_call.1} parent=1 // loop_pre_header
      _
    $region3: #{tpu_custom_call.1} parent=1 // loop_header
      %s21 = sphi 0, %s25
      %p22 = scmp.ge.s32.totalorder %s21, 4
      %s31 = sphi 0, %s33
      %s34 = sphi 0, %s31
      %s35 = sphi 0, %s34
      %s51 = sphi 0, %s35
      %s55 = sphi 0, %s55
      %s57 = sphi 0, %s55
      %s58 = sphi 0, %s57
      %s72 = sphi 0, %s58
      %s76 = sphi 0, %s76
      %s78 = sphi 0, %s76
      %s79 = sphi 0, %s78
      %s93 = sphi 0, %s79
      %s97 = sphi 0, %s97
      %s99 = sphi 0, %s97
      %s100 = sphi 0, %s99
      %s114 = sphi 0, %s100
      %s118 = sphi 0, %s118
      %s120 = sphi 0, %s118
      %s121 = sphi 0, %s120
      %s135 = sphi 0, %s121
      %s139 = sphi 0, %s139
      %s141 = sphi 0, %s139
      %s142 = sphi 0, %s141
      %s156 = sphi 0, %s142
      %s160 = sphi 0, %s160
      %s162 = sphi 0, %s160
      %s163 = sphi 0, %s162
      %s177 = sphi 0, %s163
      %s183 = sphi 0, %s185
      %s186 = sphi 0, %s183
      %s187 = sphi 0, %s186
      %s203 = sphi 0, %s187
    $region4: #{tpu_custom_call.1} parent=1 // loop_header_branch
      %24 = sbr.rel (%p22) target = $region8
    $region5: #{tpu_custom_call.1} parent=1 // loop_body
      %s26 = ssub.s32 %s21, 1
      %s27 = ssub.s32 %s21, 2
      %s28 = sadd.s32 %s21, 1
      %s29 = ssub.s32 %s21, %s28
      %p30 = scmp.eq.s32.totalorder %s29, 0
      %s32 = sadd.s32 %s31, 1
      %s33 = scalar_select %p30, %s31, %s32
      %p36 = pneg %p30
      %p37 = scmp.eq.s32.totalorder %s21, 1
      %p38 = por %p36, %p37
      %p39 = scmp.ne.s32.totalorder %s31, %s34
      %p40 = scmp.eq.s32.totalorder %s21, 0
      %p41 = por %p39, %p40
      %p42 = scmp.ne.s32.totalorder %s31, %s34
      %p43 = scmp.eq.s32.totalorder %s26, 1
      %p44 = por %p42, %p43
      %p45 = scmp.ne.s32.totalorder %s34, %s35
      %p46 = scmp.eq.s32.totalorder %s26, 0
      %p47 = por %p45, %p46
      %p48 = scmp.ne.s32.totalorder %s34, %s35
      %p49 = scmp.eq.s32.totalorder %s27, 1
      %p50 = por %p48, %p49
      %p52 = scmp.ne.s32.totalorder %s35, %s51
      %p53 = scmp.eq.s32.totalorder %s27, 0
      %p54 = por %p52, %p53
      %s56 = sadd.s32 %s55, 1
      %p59 = scmp.eq.s32.totalorder %s21, 1
      %p60 = scmp.ne.s32.totalorder %s55, %s57
      %p61 = scmp.eq.s32.totalorder %s21, 0
      %p62 = por %p60, %p61
      %p63 = scmp.ne.s32.totalorder %s55, %s57
      %p64 = scmp.eq.s32.totalorder %s26, 1
      %p65 = por %p63, %p64
      %p66 = scmp.ne.s32.totalorder %s57, %s58
      %p67 = scmp.eq.s32.totalorder %s26, 0
      %p68 = por %p66, %p67
      %p69 = scmp.ne.s32.totalorder %s57, %s58
      %p70 = scmp.eq.s32.totalorder %s27, 1
      %p71 = por %p69, %p70
      %p73 = scmp.ne.s32.totalorder %s58, %s72
      %p74 = scmp.eq.s32.totalorder %s27, 0
      %p75 = por %p73, %p74
      %s77 = sadd.s32 %s76, 1
      %p80 = scmp.eq.s32.totalorder %s21, 1
      %p81 = scmp.ne.s32.totalorder %s76, %s78
      %p82 = scmp.eq.s32.totalorder %s21, 0
      %p83 = por %p81, %p82
      %p84 = scmp.ne.s32.totalorder %s76, %s78
      %p85 = scmp.eq.s32.totalorder %s26, 1
      %p86 = por %p84, %p85
      %p87 = scmp.ne.s32.totalorder %s78, %s79
      %p88 = scmp.eq.s32.totalorder %s26, 0
      %p89 = por %p87, %p88
      %p90 = scmp.ne.s32.totalorder %s78, %s79
      %p91 = scmp.eq.s32.totalorder %s27, 1
      %p92 = por %p90, %p91
      %p94 = scmp.ne.s32.totalorder %s79, %s93
      %p95 = scmp.eq.s32.totalorder %s27, 0
      %p96 = por %p94, %p95
      %s98 = sadd.s32 %s97, 1
      %p101 = scmp.eq.s32.totalorder %s21, 1
      %p102 = scmp.ne.s32.totalorder %s97, %s99
      %p103 = scmp.eq.s32.totalorder %s21, 0
      %p104 = por %p102, %p103
      %p105 = scmp.ne.s32.totalorder %s97, %s99
      %p106 = scmp.eq.s32.totalorder %s26, 1
      %p107 = por %p105, %p106
      %p108 = scmp.ne.s32.totalorder %s99, %s100
      %p109 = scmp.eq.s32.totalorder %s26, 0
      %p110 = por %p108, %p109
      %p111 = scmp.ne.s32.totalorder %s99, %s100
      %p112 = scmp.eq.s32.totalorder %s27, 1
      %p113 = por %p111, %p112
      %p115 = scmp.ne.s32.totalorder %s100, %s114
      %p116 = scmp.eq.s32.totalorder %s27, 0
      %p117 = por %p115, %p116
      %s119 = sadd.s32 %s118, 1
      %p122 = scmp.eq.s32.totalorder %s21, 1
      %p123 = scmp.ne.s32.totalorder %s118, %s120
      %p124 = scmp.eq.s32.totalorder %s21, 0
      %p125 = por %p123, %p124
      %p126 = scmp.ne.s32.totalorder %s118, %s120
      %p127 = scmp.eq.s32.totalorder %s26, 1
      %p128 = por %p126, %p127
      %p129 = scmp.ne.s32.totalorder %s120, %s121
      %p130 = scmp.eq.s32.totalorder %s26, 0
      %p131 = por %p129, %p130
      %p132 = scmp.ne.s32.totalorder %s120, %s121
      %p133 = scmp.eq.s32.totalorder %s27, 1
      %p134 = por %p132, %p133
      %p136 = scmp.ne.s32.totalorder %s121, %s135
      %p137 = scmp.eq.s32.totalorder %s27, 0
      %p138 = por %p136, %p137
      %s140 = sadd.s32 %s139, 1
      %p143 = scmp.eq.s32.totalorder %s21, 1
      %p144 = scmp.ne.s32.totalorder %s139, %s141
      %p145 = scmp.eq.s32.totalorder %s21, 0
      %p146 = por %p144, %p145
      %p147 = scmp.ne.s32.totalorder %s139, %s141
      %p148 = scmp.eq.s32.totalorder %s26, 1
      %p149 = por %p147, %p148
      %p150 = scmp.ne.s32.totalorder %s141, %s142
      %p151 = scmp.eq.s32.totalorder %s26, 0
      %p152 = por %p150, %p151
      %p153 = scmp.ne.s32.totalorder %s141, %s142
      %p154 = scmp.eq.s32.totalorder %s27, 1
      %p155 = por %p153, %p154
      %p157 = scmp.ne.s32.totalorder %s142, %s156
      %p158 = scmp.eq.s32.totalorder %s27, 0
      %p159 = por %p157, %p158
      %s161 = sadd.s32 %s160, 1
      %p164 = scmp.eq.s32.totalorder %s21, 1
      %p165 = scmp.ne.s32.totalorder %s160, %s162
      %p166 = scmp.eq.s32.totalorder %s21, 0
      %p167 = por %p165, %p166
      %p168 = scmp.ne.s32.totalorder %s160, %s162
      %p169 = scmp.eq.s32.totalorder %s26, 1
      %p170 = por %p168, %p169
      %p171 = scmp.ne.s32.totalorder %s162, %s163
      %p172 = scmp.eq.s32.totalorder %s26, 0
      %p173 = por %p171, %p172
      %p174 = scmp.ne.s32.totalorder %s162, %s163
      %p175 = scmp.eq.s32.totalorder %s27, 1
      %p176 = por %p174, %p175
      %p178 = scmp.ne.s32.totalorder %s163, %s177
      %p179 = scmp.eq.s32.totalorder %s27, 0
      %p180 = por %p178, %p179
      %s181 = ssub.s32 %s21, %s28
      %p182 = scmp.eq.s32.totalorder %s181, 0
      %s184 = sadd.s32 %s183, 1
      %s185 = scalar_select %p182, %s183, %s184
      %p188 = pneg %p182
      %p189 = scmp.eq.s32.totalorder %s21, 1
      %p190 = por %p188, %p189
      %p191 = scmp.ne.s32.totalorder %s183, %s186
      %p192 = scmp.eq.s32.totalorder %s21, 0
      %p193 = por %p191, %p192
      %p194 = scmp.ne.s32.totalorder %s183, %s186
      %p195 = scmp.eq.s32.totalorder %s26, 1
      %p196 = por %p194, %p195
      %p197 = scmp.ne.s32.totalorder %s186, %s187
      %p198 = scmp.eq.s32.totalorder %s26, 0
      %p199 = por %p197, %p198
      %p200 = scmp.ne.s32.totalorder %s186, %s187
      %p201 = scmp.eq.s32.totalorder %s27, 1
      %p202 = por %p200, %p201
      %p204 = scmp.ne.s32.totalorder %s187, %s203
      %p205 = scmp.eq.s32.totalorder %s27, 0
      %p206 = por %p204, %p205
      %p207 = scmp.le.s32.totalorder 1, %s21
      %p208 = scmp.lt.s32.totalorder %s21, 3
      %p209 = pnand %p207, %p208
      %p210 = pneg %p209
      // Predicated region
      $region9: #{tpu_custom_call.1} parent=5 // pred_check
        _
      $region10: #{tpu_custom_call.1} parent=5 // pred_check_branch
        %212 = sbr.rel (%p209) target = $region12
      $region11: #{tpu_custom_call.1} parent=5 // pred_region
        %s213 = ssub.s32 %s21, 1
        // Predicated region
        $region13: #{tpu_custom_call.1} parent=11 // pred_check
          %p214 = pneg %p68
        $region14: #{tpu_custom_call.1} parent=11 // pred_check_branch
          %216 = sbr.rel (%p214) target = $region16
        $region15: #{tpu_custom_call.1} parent=11 // pred_region
          %s218 = ssub.s32 5120, 5120
          %219 = vsyncadd [#allocation11], %s218
          %s220 = sshll.u32 [#allocation10], 4
          %s221 = int_to_ptr.vmem [resolvable:$true] %s220
          %226 = dma.hbm_to_vmem [thread:$0]  %s1, 5120, %s221, [#allocation11], 640, 640, 40
        $region16: #{tpu_custom_call.1} parent=11 // pred_fallthru
          _
        // Predicated region
        $region17: #{tpu_custom_call.1} parent=11 // pred_check
          %p227 = pneg %p89
        $region18: #{tpu_custom_call.1} parent=11 // pred_check_branch
          %229 = sbr.rel (%p227) target = $region20
        $region19: #{tpu_custom_call.1} parent=11 // pred_region
          _
        $region20: #{tpu_custom_call.1} parent=11 // pred_fallthru
          _
        // Predicated region
        $region21: #{tpu_custom_call.1} parent=11 // pred_check
          %p230 = pneg %p110
        $region22: #{tpu_custom_call.1} parent=11 // pred_check_branch
          %232 = sbr.rel (%p230) target = $region24
        $region23: #{tpu_custom_call.1} parent=11 // pred_region
          %s234 = ssub.s32 10240, 10240
          %235 = vsyncadd [#allocation11], %s234
          %s236 = sshll.u32 [#allocation12], 4
          %s237 = int_to_ptr.vmem [resolvable:$true] %s236
          %242 = dma.hbm_to_vmem [thread:$0]  %s3, 10240, %s237, [#allocation11], 64, 64, 4
        $region24: #{tpu_custom_call.1} parent=11 // pred_fallthru
          _
        // Predicated region
        $region25: #{tpu_custom_call.1} parent=11 // pred_check
          %p243 = pneg %p131
        $region26: #{tpu_custom_call.1} parent=11 // pred_check_branch
          %245 = sbr.rel (%p243) target = $region28
        $region27: #{tpu_custom_call.1} parent=11 // pred_region
          _
        $region28: #{tpu_custom_call.1} parent=11 // pred_fallthru
          _
        // Predicated region
        $region29: #{tpu_custom_call.1} parent=11 // pred_check
          %p246 = pneg %p152
        $region30: #{tpu_custom_call.1} parent=11 // pred_check_branch
          %248 = sbr.rel (%p246) target = $region32
        $region31: #{tpu_custom_call.1} parent=11 // pred_region
          _
        $region32: #{tpu_custom_call.1} parent=11 // pred_fallthru
          _
        // Predicated region
        $region33: #{tpu_custom_call.1} parent=11 // pred_check
          %p249 = pneg %p173
        $region34: #{tpu_custom_call.1} parent=11 // pred_check_branch
          %251 = sbr.rel (%p249) target = $region36
        $region35: #{tpu_custom_call.1} parent=11 // pred_region
          _
        $region36: #{tpu_custom_call.1} parent=11 // pred_fallthru
          _
      $region12: #{tpu_custom_call.1} parent=5 // pred_fallthru
        _
      %p252 = scmp.lt.s32.totalorder %s21, 2
      // Predicated region
      $region37: #{tpu_custom_call.1} parent=5 // pred_check
        %p253 = pneg %p252
      $region38: #{tpu_custom_call.1} parent=5 // pred_check_branch
        %255 = sbr.rel (%p253) target = $region40
      $region39: #{tpu_custom_call.1} parent=5 // pred_region
        // Predicated region
        $region41: #{tpu_custom_call.1} parent=39 // pred_check
          %p256 = pneg %p41
        $region42: #{tpu_custom_call.1} parent=39 // pred_check_branch
          %258 = sbr.rel (%p256) target = $region44
        $region43: #{tpu_custom_call.1} parent=39 // pred_region
          %s259 = sand.u32 %s31, 1
          %s260 = scalar_lea.sflag [#allocation8], %s259
          %s261 = sand.u32 %s31, 1
          %s262 = smul.addr %s261, 16
          %s263 = scalar_lea.vmem [#allocation7], %s262
          %s265 = ssub.s32 256, 256
          %266 = vsyncadd %s260, %s265
          %s267 = smul.addr %s21, 2
          %s268 = smul.addr %s267, 128
          %s269 = scalar_lea.hbm %s0, %s268
          %s270 = sshll.u32 %s263, 4
          %s271 = int_to_ptr.vmem [resolvable:$true] %s270
          %276 = dma.hbm_to_vmem [thread:$0]  %s269, 256, %s271, %s260, 128, 128, 8
        $region44: #{tpu_custom_call.1} parent=39 // pred_fallthru
          _
      $region40: #{tpu_custom_call.1} parent=5 // pred_fallthru
        _
      %p277 = scmp.le.s32.totalorder 1, %s21
      %p278 = scmp.lt.s32.totalorder %s21, 3
      %p279 = pnand %p277, %p278
      %p280 = pneg %p279
      // Predicated region
      $region45: #{tpu_custom_call.1} parent=5 // pred_check
        _
      $region46: #{tpu_custom_call.1} parent=5 // pred_check_branch
        %282 = sbr.rel (%p279) target = $region48
      $region47: #{tpu_custom_call.1} parent=5 // pred_region
        %s283 = ssub.s32 %s21, 1
        %s284 = sand.u32 %s34, 1
        %s285 = scalar_lea.sflag [#allocation8], %s284
        %s286 = sand.u32 %s34, 1
        %s287 = smul.addr %s286, 16
        %s288 = scalar_lea.vmem [#allocation7], %s287
        // Predicated region
        $region49: #{tpu_custom_call.1} parent=47 // pred_check
          %p289 = pneg %p47
        $region50: #{tpu_custom_call.1} parent=47 // pred_check_branch
          %291 = sbr.rel (%p289) target = $region52
        $region51: #{tpu_custom_call.1} parent=47 // pred_region
          %292 = dma.done %s285, 256
        $region52: #{tpu_custom_call.1} parent=47 // pred_fallthru
          _
        // Predicated region
        $region53: #{tpu_custom_call.1} parent=47 // pred_check
          %p293 = pneg %p68
        $region54: #{tpu_custom_call.1} parent=47 // pred_check_branch
          %295 = sbr.rel (%p293) target = $region56
        $region55: #{tpu_custom_call.1} parent=47 // pred_region
          %296 = dma.done [#allocation11], 5120
        $region56: #{tpu_custom_call.1} parent=47 // pred_fallthru
          _
        // Predicated region
        $region57: #{tpu_custom_call.1} parent=47 // pred_check
          %p297 = pneg %p110
        $region58: #{tpu_custom_call.1} parent=47 // pred_check_branch
          %299 = sbr.rel (%p297) target = $region60
        $region59: #{tpu_custom_call.1} parent=47 // pred_region
          %300 = dma.done [#allocation11], 10240
        $region60: #{tpu_custom_call.1} parent=47 // pred_fallthru
          _
        %s301 = sand.u32 %s34, 1
        %s302 = scalar_lea.sflag [#allocation8], %s301
        %s303 = sand.u32 %s34, 1
        %s304 = smul.addr %s303, 16
        %s305 = scalar_lea.vmem [#allocation7], %s304
        %p306 = pneg %p47
        %p307 = pneg %p44
        %p308 = pneg %p68
        %p309 = pneg %p65
        %p310 = pneg %p89
        %p311 = pneg %p86
        %p312 = pneg %p110
        %p313 = pneg %p107
        %p314 = pneg %p131
        %p315 = pneg %p128
        %p316 = pneg %p152
        %p317 = pneg %p149
        %p318 = pneg %p173
        %p319 = pneg %p170
        %p320 = pneg %p199
        %p321 = pneg %p196
        %s322 = sand.u32 %s186, 1
        %s323 = scalar_lea.sflag [#allocation9], %s322
        %s324 = sand.u32 %s186, 1
        %s325 = scalar_lea.vmem [#allocation13], %s324
        %vm327 = vcmask 516096
        %328 = vst.msk [vmem:[#allocation2] sm:$0x1] %vm327, 0
        %vm329 = vcmask 517121
        %330 = vst.msk [vmem:[#allocation2 + $0x8] sm:$0x2] %vm329, 0
        %331 = vst [vmem:[#allocation3] sm:$0x11] 0
        %332 = vst [vmem:[#allocation3 + $0x10] sm:$0x22] 0
        %333 = vst [vmem:[#allocation3 + $0x10] sm:$0xcc] 0
        %v334 = vld [vmem:[%s288] sm:$0xff]
        %v335 = vld [vmem:[%s288 + $0x8] sm:$0xff]
        %v336 = vpack.c.bf16 %v335, %v334
        %v338 = vunpack.c.l.b16 %v336
        %v339 = vunpack.c.h.b16 %v336
        %v340 = vpack.c.b16 %v338, %v338
        %v341 = vpack.c.b16 %v339, %v339
        %vm342 = vcmask 1040384
        %vm343 = vcmask 1044484
        %vm344 = vmor %vm342, %vm343
        %v345 = vrot.slane %v340, 7
        %v346 = vrot.slane %v345, 4
        %v347 = vrot.slane %v341, 7
        %v348 = vsel %vm344, %v346, %v347
        %v349 = vrot.slane %v347, 4
        %vm353 = vcmask 519169
        %354 = vst.msk [vmem:[#allocation2] sm:$0xe] %vm353, %v345
        %vm355 = vcmask 519168
        %356 = vst.msk [vmem:[#allocation2 + $0x4] sm:$0xf] %vm355, %v348
        %357 = vst.msk [vmem:[#allocation2 + $0x8] sm:$0x1] %vm327, %v349
        %v358 = vld [vmem:[#allocation2] sm:$0xf]
        %v359 = vld [vmem:[#allocation2 + $0x4] sm:$0xf]
        %v360 = vld [vmem:[#allocation2 + $0x8] sm:$0x3]
        %v361 = vld [vmem:[#allocation10] sm:$0xff]
        %v362 = vld [vmem:[#allocation10 + $0x8] sm:$0xff]
        %v363 = vld [vmem:[#allocation10 + $0x10] sm:$0xff]
        %v364 = vld [vmem:[#allocation10 + $0x18] sm:$0xff]
        %v365 = vld [vmem:[#allocation10 + $0x20] sm:$0xff]
        %v366 = vld [vmem:[#allocation10 + $0x28] sm:$0xff]
        %v367 = vld [vmem:[#allocation10 + $0x30] sm:$0xff]
        %v368 = vld [vmem:[#allocation10 + $0x38] sm:$0xff]
        %v369 = vld [vmem:[#allocation10 + $0x40] sm:$0xff]
        %v370 = vld [vmem:[#allocation10 + $0x48] sm:$0xff]
        %v371 = vld [vmem:[#allocation10 + $0x50] sm:$0xff]
        %v372 = vld [vmem:[#allocation10 + $0x58] sm:$0xff]
        %v373 = vld [vmem:[#allocation10 + $0x60] sm:$0xff]
        %v374 = vld [vmem:[#allocation10 + $0x68] sm:$0xff]
        %v375 = vld [vmem:[#allocation10 + $0x70] sm:$0xff]
        %v376 = vld [vmem:[#allocation10 + $0x78] sm:$0xff]
        %v377 = vld [vmem:[#allocation10 + $0x80] sm:$0xff]
        %v378 = vld [vmem:[#allocation10 + $0x88] sm:$0xff]
        %v379 = vld [vmem:[#allocation10 + $0x90] sm:$0xff]
        %v380 = vld [vmem:[#allocation10 + $0x98] sm:$0xff]
        %v381 = vld [vmem:[#allocation10 + $0xa0] sm:$0xff]
        %v382 = vld [vmem:[#allocation10 + $0xa8] sm:$0xff]
        %v383 = vld [vmem:[#allocation10 + $0xb0] sm:$0xff]
        %v384 = vld [vmem:[#allocation10 + $0xb8] sm:$0xff]
        %v385 = vld [vmem:[#allocation10 + $0xc0] sm:$0xff]
        %v386 = vld [vmem:[#allocation10 + $0xc8] sm:$0xff]
        %v387 = vld [vmem:[#allocation10 + $0xd0] sm:$0xff]
        %v388 = vld [vmem:[#allocation10 + $0xd8] sm:$0xff]
        %v389 = vld [vmem:[#allocation10 + $0xe0] sm:$0xff]
        %v390 = vld [vmem:[#allocation10 + $0xe8] sm:$0xff]
        %v391 = vld [vmem:[#allocation10 + $0xf0] sm:$0xff]
        %v392 = vld [vmem:[#allocation10 + $0xf8] sm:$0xff]
        %v393 = vld [vmem:[#allocation10 + $0x100] sm:$0xff]
        %v394 = vld [vmem:[#allocation10 + $0x108] sm:$0xff]
        %v395 = vld [vmem:[#allocation10 + $0x110] sm:$0xff]
        %v396 = vld [vmem:[#allocation10 + $0x118] sm:$0xff]
        %v397 = vld [vmem:[#allocation10 + $0x120] sm:$0xff]
        %v398 = vld [vmem:[#allocation10 + $0x128] sm:$0xff]
        %v399 = vld [vmem:[#allocation10 + $0x130] sm:$0xff]
        %v400 = vld [vmem:[#allocation10 + $0x138] sm:$0xff]
        %v404 = vunpack.c.l.b16 %v358
        %v405 = vunpack.c.l.b16 %v359
        %v406 = vunpack.c.l.b16 %v360
        %v407 = vpack.c.b16 %v405, %v404
        %v408 = vpack.c.b16 %v406, %v406
        %v449 = vunpack.c.l.b16 %v361
        %v450 = vunpack.c.h.b16 %v361
        %v451 = vunpack.c.l.b16 %v362
        %v452 = vunpack.c.h.b16 %v362
        %v453 = vunpack.c.l.b16 %v363
        %v454 = vunpack.c.h.b16 %v363
        %v455 = vunpack.c.l.b16 %v364
        %v456 = vunpack.c.h.b16 %v364
        %v457 = vunpack.c.l.b16 %v365
        %v458 = vunpack.c.h.b16 %v365
        %v459 = vunpack.c.l.b16 %v366
        %v460 = vunpack.c.h.b16 %v366
        %v461 = vunpack.c.l.b16 %v367
        %v462 = vunpack.c.h.b16 %v367
        %v463 = vunpack.c.l.b16 %v368
        %v464 = vunpack.c.h.b16 %v368
        %v465 = vunpack.c.l.b16 %v369
        %v466 = vunpack.c.h.b16 %v369
        %v467 = vunpack.c.l.b16 %v370
        %v468 = vunpack.c.h.b16 %v370
        %v469 = vunpack.c.l.b16 %v371
        %v470 = vunpack.c.h.b16 %v371
        %v471 = vunpack.c.l.b16 %v372
        %v472 = vunpack.c.h.b16 %v372
        %v473 = vunpack.c.l.b16 %v373
        %v474 = vunpack.c.h.b16 %v373
        %v475 = vunpack.c.l.b16 %v374
        %v476 = vunpack.c.h.b16 %v374
        %v477 = vunpack.c.l.b16 %v375
        %v478 = vunpack.c.h.b16 %v375
        %v479 = vunpack.c.l.b16 %v376
        %v480 = vunpack.c.h.b16 %v376
        %v481 = vunpack.c.l.b16 %v377
        %v482 = vunpack.c.h.b16 %v377
        %v483 = vunpack.c.l.b16 %v378
        %v484 = vunpack.c.h.b16 %v378
        %v485 = vunpack.c.l.b16 %v379
        %v486 = vunpack.c.h.b16 %v379
        %v487 = vunpack.c.l.b16 %v380
        %v488 = vunpack.c.h.b16 %v380
        %v489 = vunpack.c.l.b16 %v381
        %v490 = vunpack.c.h.b16 %v381
        %v491 = vunpack.c.l.b16 %v382
        %v492 = vunpack.c.h.b16 %v382
        %v493 = vunpack.c.l.b16 %v383
        %v494 = vunpack.c.h.b16 %v383
        %v495 = vunpack.c.l.b16 %v384
        %v496 = vunpack.c.h.b16 %v384
        %v497 = vunpack.c.l.b16 %v385
        %v498 = vunpack.c.h.b16 %v385
        %v499 = vunpack.c.l.b16 %v386
        %v500 = vunpack.c.h.b16 %v386
        %v501 = vunpack.c.l.b16 %v387
        %v502 = vunpack.c.h.b16 %v387
        %v503 = vunpack.c.l.b16 %v388
        %v504 = vunpack.c.h.b16 %v388
        %v505 = vunpack.c.l.b16 %v389
        %v506 = vunpack.c.h.b16 %v389
        %v507 = vunpack.c.l.b16 %v390
        %v508 = vunpack.c.h.b16 %v390
        %v509 = vunpack.c.l.b16 %v391
        %v510 = vunpack.c.h.b16 %v391
        %v511 = vunpack.c.l.b16 %v392
        %v512 = vunpack.c.h.b16 %v392
        %v513 = vunpack.c.l.b16 %v393
        %v514 = vunpack.c.h.b16 %v393
        %v515 = vunpack.c.l.b16 %v394
        %v516 = vunpack.c.h.b16 %v394
        %v517 = vunpack.c.l.b16 %v395
        %v518 = vunpack.c.h.b16 %v395
        %v519 = vunpack.c.l.b16 %v396
        %v520 = vunpack.c.h.b16 %v396
        %v521 = vunpack.c.l.b16 %v397
        %v522 = vunpack.c.h.b16 %v397
        %v523 = vunpack.c.l.b16 %v398
        %v524 = vunpack.c.h.b16 %v398
        %v525 = vunpack.c.l.b16 %v399
        %v526 = vunpack.c.h.b16 %v399
        %v527 = vunpack.c.l.b16 %v400
        %v528 = vunpack.c.h.b16 %v400
        %v529 = vpack.c.b16 %v459, %v449
        %v530 = vpack.c.b16 %v460, %v450
        %v531 = vpack.c.b16 %v461, %v451
        %v532 = vpack.c.b16 %v462, %v452
        %v533 = vpack.c.b16 %v463, %v453
        %v534 = vpack.c.b16 %v464, %v454
        %v535 = vpack.c.b16 %v465, %v455
        %v536 = vpack.c.b16 %v466, %v456
        %v537 = vpack.c.b16 %v467, %v457
        %v538 = vpack.c.b16 %v468, %v458
        %v539 = vpack.c.b16 %v479, %v469
        %v540 = vpack.c.b16 %v480, %v470
        %v541 = vpack.c.b16 %v481, %v471
        %v542 = vpack.c.b16 %v482, %v472
        %v543 = vpack.c.b16 %v483, %v473
        %v544 = vpack.c.b16 %v484, %v474
        %v545 = vpack.c.b16 %v485, %v475
        %v546 = vpack.c.b16 %v486, %v476
        %v547 = vpack.c.b16 %v487, %v477
        %v548 = vpack.c.b16 %v488, %v478
        %v549 = vpack.c.b16 %v499, %v489
        %v550 = vpack.c.b16 %v500, %v490
        %v551 = vpack.c.b16 %v501, %v491
        %v552 = vpack.c.b16 %v502, %v492
        %v553 = vpack.c.b16 %v503, %v493
        %v554 = vpack.c.b16 %v504, %v494
        %v555 = vpack.c.b16 %v505, %v495
        %v556 = vpack.c.b16 %v506, %v496
        %v557 = vpack.c.b16 %v507, %v497
        %v558 = vpack.c.b16 %v508, %v498
        %v559 = vpack.c.b16 %v519, %v509
        %v560 = vpack.c.b16 %v520, %v510
        %v561 = vpack.c.b16 %v521, %v511
        %v562 = vpack.c.b16 %v522, %v512
        %v563 = vpack.c.b16 %v523, %v513
        %v564 = vpack.c.b16 %v524, %v514
        %v565 = vpack.c.b16 %v525, %v515
        %v566 = vpack.c.b16 %v526, %v516
        %v567 = vpack.c.b16 %v527, %v517
        %v568 = vpack.c.b16 %v528, %v518
        %vm609 = vcmask 523264
        %v611 = vsel %vm609, %v407, 0
        %v614 = vsel %vm609, %v408, 0
        %616 = vmatprep.subr.bf16.mxu0 %v530
        %617 = vmatpush1.bf16.msra.mxu0 %v529
        %618 = vmatprep.subr.bf16.mxu0 %v540
        %619 = vmatpush1.bf16.msra.mxu0 %v539
        %620 = vmatprep.subr.bf16.mxu0 %v550
        %621 = vmatpush1.bf16.msra.mxu0 %v549
        %622 = vmatprep.subr.bf16.mxu0 %v560
        %623 = vmatpush1.bf16.msra.mxu0 %v559
        %624 = vmatprep.subr.bf16.mxu0 0
        %625 = vmatpush1.bf16.msra.mxu0 0
        %626 = vmatprep.subr.bf16.mxu0 0
        %627 = vmatpush1.bf16.msra.mxu0 0
        %628 = vmatprep.subr.bf16.mxu0 0
        %629 = vmatpush1.bf16.msra.mxu0 0
        %630 = vmatprep.subr.bf16.mxu0 0
        %631 = vmatpush1.bf16.msra.mxu0 0
        %632 = vmatprep.subr.bf16.mxu0 0
        %633 = vmatpush1.bf16.msra.mxu0 0
        %634 = vmatprep.subr.bf16.mxu0 0
        %635 = vmatpush1.bf16.msra.mxu0 0
        %636 = vmatprep.subr.bf16.mxu0 0
        %637 = vmatpush1.bf16.msra.mxu0 0
        %638 = vmatprep.subr.bf16.mxu0 0
        %639 = vmatpush1.bf16.msra.mxu0 0
        %640 = vmatprep.subr.bf16.mxu0 0
        %641 = vmatpush1.bf16.msra.mxu0 0
        %642 = vmatprep.subr.bf16.mxu0 0
        %643 = vmatpush1.bf16.msra.mxu0 0
        %644 = vmatprep.subr.bf16.mxu0 0
        %645 = vmatpush1.bf16.msra.mxu0 0
        %646 = vmatprep.subr.bf16.mxu0 0
        %647 = vmatpush1.bf16.msra.mxu0 0
        %648 = vmatprep.mubr.bf16.mxu0 0
        %649 = vmatmul.mubr.bf16.gmra.mrb[0].mxu0 %v611
        %v650 = vpop.f32.mrb[0].mxu0
        %v651 = vadd.f32 0.0, %v650
        %v652 = vpop.f32.mrb[0].mxu0
        %v653 = vadd.f32 0.0, %v652
        %v654 = vpop.f32.mrb[0].mxu0
        %v655 = vadd.f32 0.0, %v654
        %v656 = vpop.f32.mrb[0].mxu0
        %v657 = vadd.f32 0.0, %v656
        %658 = vmatprep.mubr.bf16.mxu0 0
        %659 = vmatmul.mubr.bf16.gmra.mrb[0].mxu0 %v614
        %v660 = vpop.f32.mrb[0].mxu0
        %v661 = vadd.f32 0.0, %v660
        %v662 = vpop.f32.mrb[0].mxu0
        %v663 = vadd.f32 0.0, %v662
        %v664 = vpop.f32.mrb[0].mxu0
        %v665 = vpop.f32.mrb[0].mxu0
        %666 = vdwg.mxu0
        %667 = vmatprep.subr.bf16.mxu0 %v532
        %668 = vmatpush1.bf16.msra.mxu0 %v531
        %669 = vmatprep.subr.bf16.mxu0 %v542
        %670 = vmatpush1.bf16.msra.mxu0 %v541
        %671 = vmatprep.subr.bf16.mxu0 %v552
        %672 = vmatpush1.bf16.msra.mxu0 %v551
        %673 = vmatprep.subr.bf16.mxu0 %v562
        %674 = vmatpush1.bf16.msra.mxu0 %v561
        %675 = vmatprep.subr.bf16.mxu0 0
        %676 = vmatpush1.bf16.msra.mxu0 0
        %677 = vmatprep.subr.bf16.mxu0 0
        %678 = vmatpush1.bf16.msra.mxu0 0
        %679 = vmatprep.subr.bf16.mxu0 0
        %680 = vmatpush1.bf16.msra.mxu0 0
        %681 = vmatprep.subr.bf16.mxu0 0
        %682 = vmatpush1.bf16.msra.mxu0 0
        %683 = vmatprep.subr.bf16.mxu0 0
        %684 = vmatpush1.bf16.msra.mxu0 0
        %685 = vmatprep.subr.bf16.mxu0 0
        %686 = vmatpush1.bf16.msra.mxu0 0
        %687 = vmatprep.subr.bf16.mxu0 0
        %688 = vmatpush1.bf16.msra.mxu0 0
        %689 = vmatprep.subr.bf16.mxu0 0
        %690 = vmatpush1.bf16.msra.mxu0 0
        %691 = vmatprep.subr.bf16.mxu0 0
        %692 = vmatpush1.bf16.msra.mxu0 0
        %693 = vmatprep.subr.bf16.mxu0 0
        %694 = vmatpush1.bf16.msra.mxu0 0
        %695 = vmatprep.subr.bf16.mxu0 0
        %696 = vmatpush1.bf16.msra.mxu0 0
        %697 = vmatprep.subr.bf16.mxu0 0
        %698 = vmatpush1.bf16.msra.mxu0 0
        %699 = vmatprep.mubr.bf16.mxu0 0
        %700 = vmatmul.mubr.bf16.gmra.mrb[0].mxu0 %v611
        %v701 = vpop.f32.mrb[0].mxu0
        %v702 = vadd.f32 0.0, %v701
        %v703 = vpop.f32.mrb[0].mxu0
        %v704 = vadd.f32 0.0, %v703
        %v705 = vpop.f32.mrb[0].mxu0
        %v706 = vadd.f32 0.0, %v705
        %v707 = vpop.f32.mrb[0].mxu0
        %v708 = vadd.f32 0.0, %v707
        %709 = vmatprep.mubr.bf16.mxu0 0
        %710 = vmatmul.mubr.bf16.gmra.mrb[0].mxu0 %v614
        %v711 = vpop.f32.mrb[0].mxu0
        %v712 = vadd.f32 0.0, %v711
        %v713 = vpop.f32.mrb[0].mxu0
        %v714 = vadd.f32 0.0, %v713
        %v715 = vpop.f32.mrb[0].mxu0
        %v716 = vpop.f32.mrb[0].mxu0
        %717 = vdwg.mxu0
        %718 = vmatprep.subr.bf16.mxu0 %v534
        %719 = vmatpush1.bf16.msra.mxu0 %v533
        %720 = vmatprep.subr.bf16.mxu0 %v544
        %721 = vmatpush1.bf16.msra.mxu0 %v543
        %722 = vmatprep.subr.bf16.mxu0 %v554
        %723 = vmatpush1.bf16.msra.mxu0 %v553
        %724 = vmatprep.subr.bf16.mxu0 %v564
        %725 = vmatpush1.bf16.msra.mxu0 %v563
        %726 = vmatprep.subr.bf16.mxu0 0
        %727 = vmatpush1.bf16.msra.mxu0 0
        %728 = vmatprep.subr.bf16.mxu0 0
        %729 = vmatpush1.bf16.msra.mxu0 0
        %730 = vmatprep.subr.bf16.mxu0 0
        %731 = vmatpush1.bf16.msra.mxu0 0
        %732 = vmatprep.subr.bf16.mxu0 0
        %733 = vmatpush1.bf16.msra.mxu0 0
        %734 = vmatprep.subr.bf16.mxu0 0
        %735 = vmatpush1.bf16.msra.mxu0 0
        %736 = vmatprep.subr.bf16.mxu0 0
        %737 = vmatpush1.bf16.msra.mxu0 0
        %738 = vmatprep.subr.bf16.mxu0 0
        %739 = vmatpush1.bf16.msra.mxu0 0
        %740 = vmatprep.subr.bf16.mxu0 0
        %741 = vmatpush1.bf16.msra.mxu0 0
        %742 = vmatprep.subr.bf16.mxu0 0
        %743 = vmatpush1.bf16.msra.mxu0 0
        %744 = vmatprep.subr.bf16.mxu0 0
        %745 = vmatpush1.bf16.msra.mxu0 0
        %746 = vmatprep.subr.bf16.mxu0 0
        %747 = vmatpush1.bf16.msra.mxu0 0
        %748 = vmatprep.subr.bf16.mxu0 0
        %749 = vmatpush1.bf16.msra.mxu0 0
        %750 = vmatprep.mubr.bf16.mxu0 0
        %751 = vmatmul.mubr.bf16.gmra.mrb[0].mxu0 %v611
        %v752 = vpop.f32.mrb[0].mxu0
        %v753 = vadd.f32 0.0, %v752
        %v754 = vpop.f32.mrb[0].mxu0
        %v755 = vadd.f32 0.0, %v754
        %v756 = vpop.f32.mrb[0].mxu0
        %v757 = vadd.f32 0.0, %v756
        %v758 = vpop.f32.mrb[0].mxu0
        %v759 = vadd.f32 0.0, %v758
        %760 = vmatprep.mubr.bf16.mxu0 0
        %761 = vmatmul.mubr.bf16.gmra.mrb[0].mxu0 %v614
        %v762 = vpop.f32.mrb[0].mxu0
        %v763 = vadd.f32 0.0, %v762
        %v764 = vpop.f32.mrb[0].mxu0
        %v765 = vadd.f32 0.0, %v764
        %v766 = vpop.f32.mrb[0].mxu0
        %v767 = vpop.f32.mrb[0].mxu0
        %768 = vdwg.mxu0
        %769 = vmatprep.subr.bf16.mxu0 %v536
        %770 = vmatpush1.bf16.msra.mxu0 %v535
        %771 = vmatprep.subr.bf16.mxu0 %v546
        %772 = vmatpush1.bf16.msra.mxu0 %v545
        %773 = vmatprep.subr.bf16.mxu0 %v556
        %774 = vmatpush1.bf16.msra.mxu0 %v555
        %775 = vmatprep.subr.bf16.mxu0 %v566
        %776 = vmatpush1.bf16.msra.mxu0 %v565
        %777 = vmatprep.subr.bf16.mxu0 0
        %778 = vmatpush1.bf16.msra.mxu0 0
        %779 = vmatprep.subr.bf16.mxu0 0
        %780 = vmatpush1.bf16.msra.mxu0 0
        %781 = vmatprep.subr.bf16.mxu0 0
        %782 = vmatpush1.bf16.msra.mxu0 0
        %783 = vmatprep.subr.bf16.mxu0 0
        %784 = vmatpush1.bf16.msra.mxu0 0
        %785 = vmatprep.subr.bf16.mxu0 0
        %786 = vmatpush1.bf16.msra.mxu0 0
        %787 = vmatprep.subr.bf16.mxu0 0
        %788 = vmatpush1.bf16.msra.mxu0 0
        %789 = vmatprep.subr.bf16.mxu0 0
        %790 = vmatpush1.bf16.msra.mxu0 0
        %791 = vmatprep.subr.bf16.mxu0 0
        %792 = vmatpush1.bf16.msra.mxu0 0
        %793 = vmatprep.subr.bf16.mxu0 0
        %794 = vmatpush1.bf16.msra.mxu0 0
        %795 = vmatprep.subr.bf16.mxu0 0
        %796 = vmatpush1.bf16.msra.mxu0 0
        %797 = vmatprep.subr.bf16.mxu0 0
        %798 = vmatpush1.bf16.msra.mxu0 0
        %799 = vmatprep.subr.bf16.mxu0 0
        %800 = vmatpush1.bf16.msra.mxu0 0
        %801 = vmatprep.mubr.bf16.mxu0 0
        %802 = vmatmul.mubr.bf16.gmra.mrb[0].mxu0 %v611
        %v803 = vpop.f32.mrb[0].mxu0
        %v804 = vadd.f32 0.0, %v803
        %v805 = vpop.f32.mrb[0].mxu0
        %v806 = vadd.f32 0.0, %v805
        %v807 = vpop.f32.mrb[0].mxu0
        %v808 = vadd.f32 0.0, %v807
        %v809 = vpop.f32.mrb[0].mxu0
        %v810 = vadd.f32 0.0, %v809
        %811 = vmatprep.mubr.bf16.mxu0 0
        %812 = vmatmul.mubr.bf16.gmra.mrb[0].mxu0 %v614
        %v813 = vpop.f32.mrb[0].mxu0
        %v814 = vadd.f32 0.0, %v813
        %v815 = vpop.f32.mrb[0].mxu0
        %v816 = vadd.f32 0.0, %v815
        %v817 = vpop.f32.mrb[0].mxu0
        %v818 = vpop.f32.mrb[0].mxu0
        %819 = vdwg.mxu0
        %820 = vmatprep.subr.bf16.mxu0 %v538
        %821 = vmatpush1.bf16.msra.mxu0 %v537
        %822 = vmatprep.subr.bf16.mxu0 %v548
        %823 = vmatpush1.bf16.msra.mxu0 %v547
        %824 = vmatprep.subr.bf16.mxu0 %v558
        %825 = vmatpush1.bf16.msra.mxu0 %v557
        %826 = vmatprep.subr.bf16.mxu0 %v568
        %827 = vmatpush1.bf16.msra.mxu0 %v567
        %828 = vmatprep.subr.bf16.mxu0 0
        %829 = vmatpush1.bf16.msra.mxu0 0
        %830 = vmatprep.subr.bf16.mxu0 0
        %831 = vmatpush1.bf16.msra.mxu0 0
        %832 = vmatprep.subr.bf16.mxu0 0
        %833 = vmatpush1.bf16.msra.mxu0 0
        %834 = vmatprep.subr.bf16.mxu0 0
        %835 = vmatpush1.bf16.msra.mxu0 0
        %836 = vmatprep.subr.bf16.mxu0 0
        %837 = vmatpush1.bf16.msra.mxu0 0
        %838 = vmatprep.subr.bf16.mxu0 0
        %839 = vmatpush1.bf16.msra.mxu0 0
        %840 = vmatprep.subr.bf16.mxu0 0
        %841 = vmatpush1.bf16.msra.mxu0 0
        %842 = vmatprep.subr.bf16.mxu0 0
        %843 = vmatpush1.bf16.msra.mxu0 0
        %844 = vmatprep.subr.bf16.mxu0 0
        %845 = vmatpush1.bf16.msra.mxu0 0
        %846 = vmatprep.subr.bf16.mxu0 0
        %847 = vmatpush1.bf16.msra.mxu0 0
        %848 = vmatprep.subr.bf16.mxu0 0
        %849 = vmatpush1.bf16.msra.mxu0 0
        %850 = vmatprep.subr.bf16.mxu0 0
        %851 = vmatpush1.bf16.msra.mxu0 0
        %852 = vmatprep.mubr.bf16.mxu0 0
        %853 = vmatmul.mubr.bf16.gmra.mrb[0].mxu0 %v611
        %v854 = vpop.f32.mrb[0].mxu0
        %v855 = vadd.f32 0.0, %v854
        %v856 = vpop.f32.mrb[0].mxu0
        %v857 = vadd.f32 0.0, %v856
        %v858 = vpop.f32.mrb[0].mxu0
        %v859 = vadd.f32 0.0, %v858
        %v860 = vpop.f32.mrb[0].mxu0
        %v861 = vadd.f32 0.0, %v860
        %862 = vmatprep.mubr.bf16.mxu0 0
        %863 = vmatmul.mubr.bf16.gmra.mrb[0].mxu0 %v614
        %v864 = vpop.f32.mrb[0].mxu0
        %v865 = vadd.f32 0.0, %v864
        %v866 = vpop.f32.mrb[0].mxu0
        %v867 = vadd.f32 0.0, %v866
        %v868 = vpop.f32.mrb[0].mxu0
        %v869 = vpop.f32.mrb[0].mxu0
        %870 = vdwg.mxu0
        %871 = vst [vmem:[#allocation5] sm:$0xff] %v651
        %872 = vst [vmem:[#allocation5 + $0x8] sm:$0xff] %v653
        %873 = vst [vmem:[#allocation5 + $0x10] sm:$0xff] %v702
        %874 = vst [vmem:[#allocation5 + $0x18] sm:$0xff] %v704
        %875 = vst [vmem:[#allocation5 + $0x20] sm:$0xff] %v753
        %876 = vst [vmem:[#allocation5 + $0x28] sm:$0xff] %v755
        %877 = vst [vmem:[#allocation5 + $0x30] sm:$0xff] %v804
        %878 = vst [vmem:[#allocation5 + $0x38] sm:$0xff] %v806
        %879 = vst [vmem:[#allocation5 + $0x40] sm:$0xff] %v855
        %880 = vst [vmem:[#allocation5 + $0x48] sm:$0xff] %v857
        %881 = vst [vmem:[#allocation5 + $0x50] sm:$0xff] %v655
        %882 = vst [vmem:[#allocation5 + $0x58] sm:$0xff] %v657
        %883 = vst [vmem:[#allocation5 + $0x60] sm:$0xff] %v706
        %884 = vst [vmem:[#allocation5 + $0x68] sm:$0xff] %v708
        %885 = vst [vmem:[#allocation5 + $0x70] sm:$0xff] %v757
        %886 = vst [vmem:[#allocation5 + $0x78] sm:$0xff] %v759
        %887 = vst [vmem:[#allocation5 + $0x80] sm:$0xff] %v808
        %888 = vst [vmem:[#allocation5 + $0x88] sm:$0xff] %v810
        %889 = vst [vmem:[#allocation5 + $0x90] sm:$0xff] %v859
        %890 = vst [vmem:[#allocation5 + $0x98] sm:$0xff] %v861
        %891 = vst [vmem:[#allocation5 + $0xa0] sm:$0xf] %v661
        %892 = vst [vmem:[#allocation5 + $0xa8] sm:$0xf] %v663
        %893 = vst [vmem:[#allocation5 + $0xb0] sm:$0xf] %v712
        %894 = vst [vmem:[#allocation5 + $0xb8] sm:$0xf] %v714
        %895 = vst [vmem:[#allocation5 + $0xc0] sm:$0xf] %v763
        %896 = vst [vmem:[#allocation5 + $0xc8] sm:$0xf] %v765
        %897 = vst [vmem:[#allocation5 + $0xd0] sm:$0xf] %v814
        %898 = vst [vmem:[#allocation5 + $0xd8] sm:$0xf] %v816
        %899 = vst [vmem:[#allocation5 + $0xe0] sm:$0xf] %v865
        %900 = vst [vmem:[#allocation5 + $0xe8] sm:$0xf] %v867
        %v901 = vld [vmem:[#allocation5] sm:$0xff]
        %v902 = vld [vmem:[#allocation5 + $0x8] sm:$0xff]
        %v903 = vld [vmem:[#allocation5 + $0x50] sm:$0xff]
        %v904 = vld [vmem:[#allocation5 + $0x58] sm:$0xff]
        %v905 = vld [vmem:[#allocation5 + $0x10] sm:$0xfe]
        %v906 = vld [vmem:[#allocation5 + $0x18] sm:$0xfe]
        %v907 = vld [vmem:[#allocation5 + $0x60] sm:$0xff]
        %v908 = vld [vmem:[#allocation5 + $0x68] sm:$0xff]
        %v909 = vld [vmem:[#allocation5 + $0xb0] sm:$0x1]
        %v910 = vld [vmem:[#allocation5 + $0xb8] sm:$0x1]
        %vm917 = vcmask 1046528
        %v918 = vrot.slane %v905, 1
        %v919 = vrot.slane %v907, 1
        %v920 = vsel %vm917, %v918, %v919
        %v921 = vrot.slane %v906, 1
        %v922 = vrot.slane %v908, 1
        %v923 = vsel %vm917, %v921, %v922
        %v924 = vrot.slane %v909, 1
        %v925 = vsel %vm917, %v919, %v924
        %v926 = vrot.slane %v910, 1
        %v927 = vsel %vm917, %v922, %v926
        %v932 = vadd.f32 %v901, %v920
        %v933 = vadd.f32 %v902, %v923
        %v934 = vadd.f32 %v903, %v925
        %v935 = vadd.f32 %v904, %v927
        %v936 = vld [vmem:[#allocation5 + $0x20] sm:$0xfc]
        %v937 = vld [vmem:[#allocation5 + $0x28] sm:$0xfc]
        %v938 = vld [vmem:[#allocation5 + $0x70] sm:$0xff]
        %v939 = vld [vmem:[#allocation5 + $0x78] sm:$0xff]
        %v940 = vld [vmem:[#allocation5 + $0xc0] sm:$0x3]
        %v941 = vld [vmem:[#allocation5 + $0xc8] sm:$0x3]
        %vm948 = vcmask 1045504
        %v949 = vrot.slane %v936, 2
        %v950 = vrot.slane %v938, 2
        %v951 = vsel %vm948, %v949, %v950
        %v952 = vrot.slane %v937, 2
        %v953 = vrot.slane %v939, 2
        %v954 = vsel %vm948, %v952, %v953
        %v955 = vrot.slane %v940, 2
        %v956 = vsel %vm948, %v950, %v955
        %v957 = vrot.slane %v941, 2
        %v958 = vsel %vm948, %v953, %v957
        %v963 = vadd.f32 %v932, %v951
        %v964 = vadd.f32 %v933, %v954
        %v965 = vadd.f32 %v934, %v956
        %v966 = vadd.f32 %v935, %v958
        %v967 = vld [vmem:[#allocation5 + $0x30] sm:$0xf8]
        %v968 = vld [vmem:[#allocation5 + $0x38] sm:$0xf8]
        %v969 = vld [vmem:[#allocation5 + $0x80] sm:$0xff]
        %v970 = vld [vmem:[#allocation5 + $0x88] sm:$0xff]
        %v971 = vld [vmem:[#allocation5 + $0xd0] sm:$0x7]
        %v972 = vld [vmem:[#allocation5 + $0xd8] sm:$0x7]
        %vm979 = vcmask 1044480
        %v980 = vrot.slane %v967, 3
        %v981 = vrot.slane %v969, 3
        %v982 = vsel %vm979, %v980, %v981
        %v983 = vrot.slane %v968, 3
        %v984 = vrot.slane %v970, 3
        %v985 = vsel %vm979, %v983, %v984
        %v986 = vrot.slane %v971, 3
        %v987 = vsel %vm979, %v981, %v986
        %v988 = vrot.slane %v972, 3
        %v989 = vsel %vm979, %v984, %v988
        %v994 = vadd.f32 %v963, %v982
        %v995 = vadd.f32 %v964, %v985
        %v996 = vadd.f32 %v965, %v987
        %v997 = vadd.f32 %v966, %v989
        %v998 = vld [vmem:[#allocation5 + $0x40] sm:$0xf0]
        %v999 = vld [vmem:[#allocation5 + $0x48] sm:$0xf0]
        %v1000 = vld [vmem:[#allocation5 + $0x90] sm:$0xff]
        %v1001 = vld [vmem:[#allocation5 + $0x98] sm:$0xff]
        %v1002 = vld [vmem:[#allocation5 + $0xe0] sm:$0xf]
        %v1003 = vld [vmem:[#allocation5 + $0xe8] sm:$0xf]
        %vm1010 = vcmask 1043456
        %v1011 = vrot.slane %v998, 4
        %v1012 = vrot.slane %v1000, 4
        %v1013 = vsel %vm1010, %v1011, %v1012
        %v1014 = vrot.slane %v999, 4
        %v1015 = vrot.slane %v1001, 4
        %v1016 = vsel %vm1010, %v1014, %v1015
        %v1017 = vrot.slane %v1002, 4
        %v1018 = vsel %vm1010, %v1012, %v1017
        %v1019 = vrot.slane %v1003, 4
        %v1020 = vsel %vm1010, %v1015, %v1019
        %v1025 = vadd.f32 %v994, %v1013
        %v1026 = vadd.f32 %v995, %v1016
        %v1027 = vadd.f32 %v996, %v1018
        %v1028 = vadd.f32 %v997, %v1020
        %v1029 = vld [vmem:[%s2] sm:$0x3]
        %v1031 = vlaneseq
        %v1032 = vshrl.u32 %v1031, 7
        %v1033 = vsub.s32 0, %v1032
        %v1034 = vrot.slane %v1029, %v1033
        %v1035 = vlaneseq
        %v1036 = vshrl.u32 %v1035, 7
        %v1037 = vsub.s32 1, %v1036
        %v1038 = vrot.slane %v1029, %v1037
        %v1041 = vadd.f32 %v1025, %v1034
        %v1042 = vadd.f32 %v1026, %v1038
        %v1043 = vadd.f32 %v1027, %v1034
        %v1044 = vadd.f32 %v1028, %v1038
        %v1045 = vmax.f32 %v1041, 0.0
        %v1046 = vmax.f32 %v1042, 0.0
        %v1047 = vmax.f32 %v1043, 0.0
        %v1048 = vmax.f32 %v1044, 0.0
        %v1049 = vpack.c.bf16 %v1047, %v1045
        %v1050 = vpack.c.bf16 %v1048, %v1046
        %v1053 = vunpack.c.l.b16 %v1049
        %v1054 = vunpack.c.l.b16 %v1050
        %v1055 = vunpack.c.h.b16 %v1049
        %v1056 = vunpack.c.h.b16 %v1050
        %v1057 = vpack.c.b16 %v1054, %v1053
        %v1058 = vpack.c.b16 %v1056, %v1055
        %v1059 = vrot.slane %v1057, 7
        %v1060 = vrot.slane %v1059, 4
        %v1061 = vrot.slane %v1058, 7
        %v1062 = vsel %vm344, %v1060, %v1061
        %v1063 = vrot.slane %v1061, 4
        %1067 = vst [vmem:[#allocation3] sm:$0xee] %v1059
        %1068 = vst [vmem:[#allocation3 + $0x8] sm:$0xff] %v1062
        %1069 = vst [vmem:[#allocation3 + $0x10] sm:$0x11] %v1063
        %v1070 = vld [vmem:[#allocation3] sm:$0xff]
        %v1071 = vld [vmem:[#allocation3 + $0x8] sm:$0xff]
        %v1072 = vld [vmem:[#allocation3 + $0x10] sm:$0x33]
        %1073 = vst [vmem:[#allocation4] sm:$0xff] %v1070
        %1074 = vst [vmem:[#allocation4 + $0x28] sm:$0xff] %v1071
        %1075 = vst [vmem:[#allocation4 + $0x50] sm:$0x33] %v1072
        %v1076 = vld [vmem:[#allocation3] sm:$0xff]
        %v1077 = vld [vmem:[#allocation3 + $0x8] sm:$0xff]
        %v1078 = vld [vmem:[#allocation3 + $0x10] sm:$0x77]
        %vm1079 = vsmask.f32 3328
        %vm1080 = vsmask.f32 7440
        %vm1081 = vmor %vm1079, %vm1080
        %v1083 = vshrl.u32 %v1076, 16
        %v1085 = vrot.slane %v1083, 4
        %v1086 = vshll.u32 %v1076, 16
        %v1088 = vrot.slane %v1086, 5
        %v1089 = vor.u32 %v1085, %v1088
        %v1090 = vrot.slane %v1089, 4
        %v1092 = vshll.u32 %v1077, 16
        %v1094 = vrot.slane %v1092, 5
        %v1095 = vsel %vm1081, %v1090, %v1094
        %v1096 = vshrl.u32 %v1077, 16
        %v1098 = vrot.slane %v1096, 4
        %v1099 = vor.u32 %v1098, %v1094
        %v1100 = vrot.slane %v1099, 4
        %v1102 = vshll.u32 %v1078, 16
        %v1104 = vrot.slane %v1102, 5
        %v1105 = vsel %vm1081, %v1100, %v1104
        %v1106 = vshrl.u32 %v1078, 16
        %v1108 = vrot.slane %v1106, 4
        %v1109 = vor.u32 %v1108, %v1104
        %v1110 = vrot.slane %v1109, 4
        %1114 = vst [vmem:[#allocation4 + $0x8] sm:$0xff] %v1095
        %1115 = vst [vmem:[#allocation4 + $0x30] sm:$0xff] %v1105
        %1116 = vst [vmem:[#allocation4 + $0x58] sm:$0x33] %v1110
        %v1117 = vld [vmem:[#allocation3] sm:$0xee]
        %v1118 = vld [vmem:[#allocation3 + $0x8] sm:$0xff]
        %v1119 = vld [vmem:[#allocation3 + $0x10] sm:$0x77]
        %vm1123 = vcmask 1042432
        %vm1124 = vcmask 1046532
        %vm1125 = vmor %vm1123, %vm1124
        %v1126 = vrot.slane %v1117, 5
        %v1127 = vrot.slane %v1126, 4
        %v1128 = vrot.slane %v1118, 5
        %v1129 = vsel %vm1125, %v1127, %v1128
        %v1130 = vrot.slane %v1128, 4
        %v1131 = vrot.slane %v1119, 5
        %v1132 = vsel %vm1125, %v1130, %v1131
        %v1133 = vrot.slane %v1131, 4
        %1137 = vst [vmem:[#allocation4 + $0x10] sm:$0xff] %v1129
        %1138 = vst [vmem:[#allocation4 + $0x38] sm:$0xff] %v1132
        %1139 = vst [vmem:[#allocation4 + $0x60] sm:$0x33] %v1133
        %v1140 = vld [vmem:[#allocation3] sm:$0xee]
        %v1141 = vld [vmem:[#allocation3 + $0x8] sm:$0xff]
        %v1142 = vld [vmem:[#allocation3 + $0x10] sm:$0xff]
        %vm1143 = vsmask.f32 2304
        %vm1144 = vsmask.f32 6416
        %vm1145 = vmor %vm1143, %vm1144
        %v1147 = vshrl.u32 %v1140, 16
        %v1149 = vrot.slane %v1147, 5
        %v1150 = vshll.u32 %v1140, 16
        %v1152 = vrot.slane %v1150, 6
        %v1153 = vor.u32 %v1149, %v1152
        %v1154 = vrot.slane %v1153, 4
        %v1156 = vshrl.u32 %v1141, 16
        %v1158 = vrot.slane %v1156, 5
        %v1159 = vshll.u32 %v1141, 16
        %v1161 = vrot.slane %v1159, 6
        %v1162 = vor.u32 %v1158, %v1161
        %v1163 = vsel %vm1145, %v1154, %v1162
        %v1164 = vrot.slane %v1162, 4
        %v1166 = vshrl.u32 %v1142, 16
        %v1168 = vrot.slane %v1166, 5
        %v1169 = vshll.u32 %v1142, 16
        %v1171 = vrot.slane %v1169, 6
        %v1172 = vor.u32 %v1168, %v1171
        %v1173 = vsel %vm1145, %v1164, %v1172
        %v1174 = vrot.slane %v1172, 4
        %1178 = vst [vmem:[#allocation4 + $0x18] sm:$0xff] %v1163
        %1179 = vst [vmem:[#allocation4 + $0x40] sm:$0xff] %v1173
        %1180 = vst [vmem:[#allocation4 + $0x68] sm:$0x33] %v1174
        %v1181 = vld [vmem:[#allocation3] sm:$0xcc]
        %v1182 = vld [vmem:[#allocation3 + $0x8] sm:$0xff]
        %v1183 = vld [vmem:[#allocation3 + $0x10] sm:$0xff]
        %vm1187 = vcmask 1041408
        %vm1188 = vcmask 1045508
        %vm1189 = vmor %vm1187, %vm1188
        %v1190 = vrot.slane %v1181, 6
        %v1191 = vrot.slane %v1190, 4
        %v1192 = vrot.slane %v1182, 6
        %v1193 = vsel %vm1189, %v1191, %v1192
        %v1194 = vrot.slane %v1192, 4
        %v1195 = vrot.slane %v1183, 6
        %v1196 = vsel %vm1189, %v1194, %v1195
        %v1197 = vrot.slane %v1195, 4
        %1201 = vst [vmem:[#allocation4 + $0x20] sm:$0xff] %v1193
        %1202 = vst [vmem:[#allocation4 + $0x48] sm:$0xff] %v1196
        %1203 = vst [vmem:[#allocation4 + $0x70] sm:$0x33] %v1197
        %v1204 = vld [vmem:[#allocation4] sm:$0xff]
        %v1205 = vld [vmem:[#allocation4 + $0x8] sm:$0xff]
        %v1206 = vld [vmem:[#allocation4 + $0x10] sm:$0xff]
        %v1207 = vld [vmem:[#allocation4 + $0x18] sm:$0xff]
        %v1208 = vld [vmem:[#allocation4 + $0x20] sm:$0xff]
        %v1209 = vld [vmem:[#allocation4 + $0x28] sm:$0xff]
        %v1210 = vld [vmem:[#allocation4 + $0x30] sm:$0xff]
        %v1211 = vld [vmem:[#allocation4 + $0x38] sm:$0xff]
        %v1212 = vld [vmem:[#allocation4 + $0x40] sm:$0xff]
        %v1213 = vld [vmem:[#allocation4 + $0x48] sm:$0xff]
        %v1214 = vld [vmem:[#allocation4 + $0x50] sm:$0x33]
        %v1215 = vld [vmem:[#allocation4 + $0x58] sm:$0x33]
        %v1216 = vld [vmem:[#allocation4 + $0x60] sm:$0x33]
        %v1217 = vld [vmem:[#allocation4 + $0x68] sm:$0x33]
        %v1218 = vld [vmem:[#allocation4 + $0x70] sm:$0x33]
        %v1219 = vld [vmem:[#allocation12] sm:$0xf]
        %v1220 = vld [vmem:[#allocation12 + $0x4] sm:$0xf]
        %v1221 = vld [vmem:[#allocation12 + $0x8] sm:$0xf]
        %v1222 = vld [vmem:[#allocation12 + $0xc] sm:$0xf]
        %v1223 = vld [vmem:[#allocation12 + $0x10] sm:$0xf]
        %v1224 = vld [vmem:[#allocation12 + $0x14] sm:$0xf]
        %v1225 = vld [vmem:[#allocation12 + $0x18] sm:$0xf]
        %v1226 = vld [vmem:[#allocation12 + $0x1c] sm:$0xf]
        %v1227 = vld [vmem:[#allocation12 + $0x20] sm:$0xf]
        %v1228 = vld [vmem:[#allocation12 + $0x24] sm:$0xf]
        %v1229 = vld [vmem:[#allocation12 + $0x28] sm:$0xf]
        %v1230 = vld [vmem:[#allocation12 + $0x2c] sm:$0xf]
        %v1231 = vld [vmem:[#allocation12 + $0x30] sm:$0xf]
        %v1232 = vld [vmem:[#allocation12 + $0x34] sm:$0xf]
        %v1233 = vld [vmem:[#allocation12 + $0x38] sm:$0xf]
        %v1234 = vld [vmem:[#allocation12 + $0x3c] sm:$0xf]
        %v1235 = vld [vmem:[#allocation12 + $0x40] sm:$0xf]
        %v1236 = vld [vmem:[#allocation12 + $0x44] sm:$0xf]
        %v1237 = vld [vmem:[#allocation12 + $0x48] sm:$0xf]
        %v1238 = vld [vmem:[#allocation12 + $0x4c] sm:$0xf]
        %v1239 = vld [vmem:[#allocation12 + $0x50] sm:$0xf]
        %v1240 = vld [vmem:[#allocation12 + $0x54] sm:$0xf]
        %v1241 = vld [vmem:[#allocation12 + $0x58] sm:$0xf]
        %v1242 = vld [vmem:[#allocation12 + $0x5c] sm:$0xf]
        %v1243 = vld [vmem:[#allocation12 + $0x60] sm:$0xf]
        %v1244 = vld [vmem:[#allocation12 + $0x64] sm:$0xf]
        %v1245 = vld [vmem:[#allocation12 + $0x68] sm:$0xf]
        %v1246 = vld [vmem:[#allocation12 + $0x6c] sm:$0xf]
        %v1247 = vld [vmem:[#allocation12 + $0x70] sm:$0xf]
        %v1248 = vld [vmem:[#allocation12 + $0x74] sm:$0xf]
        %v1249 = vld [vmem:[#allocation12 + $0x78] sm:$0xf]
        %v1250 = vld [vmem:[#allocation12 + $0x7c] sm:$0xf]
        %v1251 = vld [vmem:[#allocation12 + $0x80] sm:$0xf]
        %v1252 = vld [vmem:[#allocation12 + $0x84] sm:$0xf]
        %v1253 = vld [vmem:[#allocation12 + $0x88] sm:$0xf]
        %v1254 = vld [vmem:[#allocation12 + $0x8c] sm:$0xf]
        %v1255 = vld [vmem:[#allocation12 + $0x90] sm:$0xf]
        %v1256 = vld [vmem:[#allocation12 + $0x94] sm:$0xf]
        %v1257 = vld [vmem:[#allocation12 + $0x98] sm:$0xf]
        %v1258 = vld [vmem:[#allocation12 + $0x9c] sm:$0xf]
        %v1259 = vld [vmem:[#allocation12 + $0xa0] sm:$0xf]
        %v1260 = vld [vmem:[#allocation12 + $0xa4] sm:$0xf]
        %v1261 = vld [vmem:[#allocation12 + $0xa8] sm:$0xf]
        %v1262 = vld [vmem:[#allocation12 + $0xac] sm:$0xf]
        %v1263 = vld [vmem:[#allocation12 + $0xb0] sm:$0xf]
        %v1264 = vld [vmem:[#allocation12 + $0xb4] sm:$0xf]
        %v1265 = vld [vmem:[#allocation12 + $0xb8] sm:$0xf]
        %v1266 = vld [vmem:[#allocation12 + $0xbc] sm:$0xf]
        %v1267 = vld [vmem:[#allocation12 + $0xc0] sm:$0xf]
        %v1268 = vld [vmem:[#allocation12 + $0xc4] sm:$0xf]
        %v1269 = vld [vmem:[#allocation12 + $0xc8] sm:$0xf]
        %v1270 = vld [vmem:[#allocation12 + $0xcc] sm:$0xf]
        %v1271 = vld [vmem:[#allocation12 + $0xd0] sm:$0xf]
        %v1272 = vld [vmem:[#allocation12 + $0xd4] sm:$0xf]
        %v1273 = vld [vmem:[#allocation12 + $0xd8] sm:$0xf]
        %v1274 = vld [vmem:[#allocation12 + $0xdc] sm:$0xf]
        %v1275 = vld [vmem:[#allocation12 + $0xe0] sm:$0xf]
        %v1276 = vld [vmem:[#allocation12 + $0xe4] sm:$0xf]
        %v1277 = vld [vmem:[#allocation12 + $0xe8] sm:$0xf]
        %v1278 = vld [vmem:[#allocation12 + $0xec] sm:$0xf]
        %v1279 = vld [vmem:[#allocation12 + $0xf0] sm:$0xf]
        %v1280 = vld [vmem:[#allocation12 + $0xf4] sm:$0xf]
        %v1281 = vld [vmem:[#allocation12 + $0xf8] sm:$0xf]
        %v1282 = vld [vmem:[#allocation12 + $0xfc] sm:$0xf]
        %v1283 = vld [vmem:[#allocation12 + $0x100] sm:$0xf]
        %v1284 = vld [vmem:[#allocation12 + $0x104] sm:$0xf]
        %v1285 = vld [vmem:[#allocation12 + $0x108] sm:$0xf]
        %v1286 = vld [vmem:[#allocation12 + $0x10c] sm:$0xf]
        %v1287 = vld [vmem:[#allocation12 + $0x110] sm:$0xf]
        %v1288 = vld [vmem:[#allocation12 + $0x114] sm:$0xf]
        %v1289 = vld [vmem:[#allocation12 + $0x118] sm:$0xf]
        %v1290 = vld [vmem:[#allocation12 + $0x11c] sm:$0xf]
        %v1291 = vld [vmem:[#allocation12 + $0x120] sm:$0xf]
        %v1292 = vld [vmem:[#allocation12 + $0x124] sm:$0xf]
        %v1293 = vld [vmem:[#allocation12 + $0x128] sm:$0xf]
        %v1294 = vld [vmem:[#allocation12 + $0x12c] sm:$0xf]
        %v1295 = vld [vmem:[#allocation12 + $0x130] sm:$0xf]
        %v1296 = vld [vmem:[#allocation12 + $0x134] sm:$0xf]
        %v1297 = vld [vmem:[#allocation12 + $0x138] sm:$0xf]
        %v1298 = vld [vmem:[#allocation12 + $0x13c] sm:$0xf]
        %v1299 = vld [vmem:[#allocation12 + $0x140] sm:$0xf]
        %v1300 = vld [vmem:[#allocation12 + $0x144] sm:$0xf]
        %v1301 = vld [vmem:[#allocation12 + $0x148] sm:$0xf]
        %v1302 = vld [vmem:[#allocation12 + $0x14c] sm:$0xf]
        %v1303 = vld [vmem:[#allocation12 + $0x150] sm:$0xf]
        %v1304 = vld [vmem:[#allocation12 + $0x154] sm:$0xf]
        %v1305 = vld [vmem:[#allocation12 + $0x158] sm:$0xf]
        %v1306 = vld [vmem:[#allocation12 + $0x15c] sm:$0xf]
        %v1307 = vld [vmem:[#allocation12 + $0x160] sm:$0xf]
        %v1308 = vld [vmem:[#allocation12 + $0x164] sm:$0xf]
        %v1309 = vld [vmem:[#allocation12 + $0x168] sm:$0xf]
        %v1310 = vld [vmem:[#allocation12 + $0x16c] sm:$0xf]
        %v1311 = vld [vmem:[#allocation12 + $0x170] sm:$0xf]
        %v1312 = vld [vmem:[#allocation12 + $0x174] sm:$0xf]
        %v1313 = vld [vmem:[#allocation12 + $0x178] sm:$0xf]
        %v1314 = vld [vmem:[#allocation12 + $0x17c] sm:$0xf]
        %v1315 = vld [vmem:[#allocation12 + $0x180] sm:$0xf]
        %v1316 = vld [vmem:[#allocation12 + $0x184] sm:$0xf]
        %v1317 = vld [vmem:[#allocation12 + $0x188] sm:$0xf]
        %v1318 = vld [vmem:[#allocation12 + $0x18c] sm:$0xf]
        %v1319 = vld [vmem:[#allocation12 + $0x190] sm:$0xf]
        %v1320 = vld [vmem:[#allocation12 + $0x194] sm:$0xf]
        %v1321 = vld [vmem:[#allocation12 + $0x198] sm:$0xf]
        %v1322 = vld [vmem:[#allocation12 + $0x19c] sm:$0xf]
        %v1323 = vld [vmem:[#allocation12 + $0x1a0] sm:$0xf]
        %v1324 = vld [vmem:[#allocation12 + $0x1a4] sm:$0xf]
        %v1325 = vld [vmem:[#allocation12 + $0x1a8] sm:$0xf]
        %v1326 = vld [vmem:[#allocation12 + $0x1ac] sm:$0xf]
        %v1327 = vld [vmem:[#allocation12 + $0x1b0] sm:$0xf]
        %v1328 = vld [vmem:[#allocation12 + $0x1b4] sm:$0xf]
        %v1329 = vld [vmem:[#allocation12 + $0x1b8] sm:$0xf]
        %v1330 = vld [vmem:[#allocation12 + $0x1bc] sm:$0xf]
        %v1331 = vld [vmem:[#allocation12 + $0x1c0] sm:$0xf]
        %v1332 = vld [vmem:[#allocation12 + $0x1c4] sm:$0xf]
        %v1333 = vld [vmem:[#allocation12 + $0x1c8] sm:$0xf]
        %v1334 = vld [vmem:[#allocation12 + $0x1cc] sm:$0xf]
        %v1335 = vld [vmem:[#allocation12 + $0x1d0] sm:$0xf]
        %v1336 = vld [vmem:[#allocation12 + $0x1d4] sm:$0xf]
        %v1337 = vld [vmem:[#allocation12 + $0x1d8] sm:$0xf]
        %v1338 = vld [vmem:[#allocation12 + $0x1dc] sm:$0xf]
        %v1339 = vld [vmem:[#allocation12 + $0x1e0] sm:$0xf]
        %v1340 = vld [vmem:[#allocation12 + $0x1e4] sm:$0xf]
        %v1341 = vld [vmem:[#allocation12 + $0x1e8] sm:$0xf]
        %v1342 = vld [vmem:[#allocation12 + $0x1ec] sm:$0xf]
        %v1343 = vld [vmem:[#allocation12 + $0x1f0] sm:$0xf]
        %v1344 = vld [vmem:[#allocation12 + $0x1f4] sm:$0xf]
        %v1345 = vld [vmem:[#allocation12 + $0x1f8] sm:$0xf]
        %v1346 = vld [vmem:[#allocation12 + $0x1fc] sm:$0xf]
        %v1347 = vld [vmem:[#allocation12 + $0x200] sm:$0xf]
        %v1348 = vld [vmem:[#allocation12 + $0x204] sm:$0xf]
        %v1349 = vld [vmem:[#allocation12 + $0x208] sm:$0xf]
        %v1350 = vld [vmem:[#allocation12 + $0x20c] sm:$0xf]
        %v1351 = vld [vmem:[#allocation12 + $0x210] sm:$0xf]
        %v1352 = vld [vmem:[#allocation12 + $0x214] sm:$0xf]
        %v1353 = vld [vmem:[#allocation12 + $0x218] sm:$0xf]
        %v1354 = vld [vmem:[#allocation12 + $0x21c] sm:$0xf]
        %v1355 = vld [vmem:[#allocation12 + $0x220] sm:$0xf]
        %v1356 = vld [vmem:[#allocation12 + $0x224] sm:$0xf]
        %v1357 = vld [vmem:[#allocation12 + $0x228] sm:$0xf]
        %v1358 = vld [vmem:[#allocation12 + $0x22c] sm:$0xf]
        %v1359 = vld [vmem:[#allocation12 + $0x230] sm:$0xf]
        %v1360 = vld [vmem:[#allocation12 + $0x234] sm:$0xf]
        %v1361 = vld [vmem:[#allocation12 + $0x238] sm:$0xf]
        %v1362 = vld [vmem:[#allocation12 + $0x23c] sm:$0xf]
        %v1363 = vld [vmem:[#allocation12 + $0x240] sm:$0xf]
        %v1364 = vld [vmem:[#allocation12 + $0x244] sm:$0xf]
        %v1365 = vld [vmem:[#allocation12 + $0x248] sm:$0xf]
        %v1366 = vld [vmem:[#allocation12 + $0x24c] sm:$0xf]
        %v1367 = vld [vmem:[#allocation12 + $0x250] sm:$0xf]
        %v1368 = vld [vmem:[#allocation12 + $0x254] sm:$0xf]
        %v1369 = vld [vmem:[#allocation12 + $0x258] sm:$0xf]
        %v1370 = vld [vmem:[#allocation12 + $0x25c] sm:$0xf]
        %v1371 = vld [vmem:[#allocation12 + $0x260] sm:$0xf]
        %v1372 = vld [vmem:[#allocation12 + $0x264] sm:$0xf]
        %v1373 = vld [vmem:[#allocation12 + $0x268] sm:$0xf]
        %v1374 = vld [vmem:[#allocation12 + $0x26c] sm:$0xf]
        %v1375 = vld [vmem:[#allocation12 + $0x270] sm:$0xf]
        %v1376 = vld [vmem:[#allocation12 + $0x274] sm:$0xf]
        %v1377 = vld [vmem:[#allocation12 + $0x278] sm:$0xf]
        %v1378 = vld [vmem:[#allocation12 + $0x27c] sm:$0xf]
        %v1379 = vld [vmem:[%s4] sm:$0x1]
        %v1381 = vlaneseq
        %v1382 = vshrl.u32 %v1381, 7
        %v1383 = vsub.s32 0, %v1382
        %v1384 = vrot.slane %v1379, %v1383
        %v1401 = vunpack.c.l.b16 %v1204
        %v1402 = vunpack.c.h.b16 %v1204
        %v1403 = vunpack.c.l.b16 %v1205
        %v1404 = vunpack.c.h.b16 %v1205
        %v1405 = vunpack.c.l.b16 %v1206
        %v1406 = vunpack.c.h.b16 %v1206
        %v1407 = vunpack.c.l.b16 %v1207
        %v1408 = vunpack.c.h.b16 %v1207
        %v1409 = vunpack.c.l.b16 %v1208
        %v1410 = vunpack.c.h.b16 %v1208
        %v1411 = vunpack.c.l.b16 %v1209
        %v1412 = vunpack.c.h.b16 %v1209
        %v1413 = vunpack.c.l.b16 %v1210
        %v1414 = vunpack.c.h.b16 %v1210
        %v1415 = vunpack.c.l.b16 %v1211
        %v1416 = vunpack.c.h.b16 %v1211
        %v1417 = vunpack.c.l.b16 %v1212
        %v1418 = vunpack.c.h.b16 %v1212
        %v1419 = vunpack.c.l.b16 %v1213
        %v1420 = vunpack.c.h.b16 %v1213
        %v1421 = vunpack.c.l.b16 %v1214
        %v1422 = vunpack.c.h.b16 %v1214
        %v1423 = vunpack.c.l.b16 %v1215
        %v1424 = vunpack.c.h.b16 %v1215
        %v1425 = vunpack.c.l.b16 %v1216
        %v1426 = vunpack.c.h.b16 %v1216
        %v1427 = vunpack.c.l.b16 %v1217
        %v1428 = vunpack.c.h.b16 %v1217
        %v1429 = vunpack.c.l.b16 %v1218
        %v1430 = vunpack.c.h.b16 %v1218
        %v1431 = vpack.c.b16 %v1411, %v1401
        %v1432 = vpack.c.b16 %v1412, %v1402
        %v1433 = vpack.c.b16 %v1413, %v1403
        %v1434 = vpack.c.b16 %v1414, %v1404
        %v1435 = vpack.c.b16 %v1415, %v1405
        %v1436 = vpack.c.b16 %v1416, %v1406
        %v1437 = vpack.c.b16 %v1417, %v1407
        %v1438 = vpack.c.b16 %v1418, %v1408
        %v1439 = vpack.c.b16 %v1419, %v1409
        %v1440 = vpack.c.b16 %v1420, %v1410
        %v1441 = vpack.c.b16 %v1421, %v1421
        %v1442 = vpack.c.b16 %v1422, %v1422
        %v1443 = vpack.c.b16 %v1423, %v1423
        %v1444 = vpack.c.b16 %v1424, %v1424
        %v1445 = vpack.c.b16 %v1425, %v1425
        %v1446 = vpack.c.b16 %v1426, %v1426
        %v1447 = vpack.c.b16 %v1427, %v1427
        %v1448 = vpack.c.b16 %v1428, %v1428
        %v1449 = vpack.c.b16 %v1429, %v1429
        %v1450 = vpack.c.b16 %v1430, %v1430
        %v1631 = vunpack.c.l.b16 %v1219
        %v1632 = vunpack.c.l.b16 %v1220
        %v1633 = vunpack.c.l.b16 %v1221
        %v1634 = vunpack.c.l.b16 %v1222
        %v1635 = vunpack.c.l.b16 %v1223
        %v1636 = vunpack.c.l.b16 %v1224
        %v1637 = vunpack.c.l.b16 %v1225
        %v1638 = vunpack.c.l.b16 %v1226
        %v1639 = vunpack.c.l.b16 %v1227
        %v1640 = vunpack.c.l.b16 %v1228
        %v1641 = vunpack.c.l.b16 %v1229
        %v1642 = vunpack.c.l.b16 %v1230
        %v1643 = vunpack.c.l.b16 %v1231
        %v1644 = vunpack.c.l.b16 %v1232
        %v1645 = vunpack.c.l.b16 %v1233
        %v1646 = vunpack.c.l.b16 %v1234
        %v1647 = vunpack.c.l.b16 %v1235
        %v1648 = vunpack.c.l.b16 %v1236
        %v1649 = vunpack.c.l.b16 %v1237
        %v1650 = vunpack.c.l.b16 %v1238
        %v1651 = vunpack.c.l.b16 %v1239
        %v1652 = vunpack.c.l.b16 %v1240
        %v1653 = vunpack.c.l.b16 %v1241
        %v1654 = vunpack.c.l.b16 %v1242
        %v1655 = vunpack.c.l.b16 %v1243
        %v1656 = vunpack.c.l.b16 %v1244
        %v1657 = vunpack.c.l.b16 %v1245
        %v1658 = vunpack.c.l.b16 %v1246
        %v1659 = vunpack.c.l.b16 %v1247
        %v1660 = vunpack.c.l.b16 %v1248
        %v1661 = vunpack.c.l.b16 %v1249
        %v1662 = vunpack.c.l.b16 %v1250
        %v1663 = vunpack.c.l.b16 %v1251
        %v1664 = vunpack.c.l.b16 %v1252
        %v1665 = vunpack.c.l.b16 %v1253
        %v1666 = vunpack.c.l.b16 %v1254
        %v1667 = vunpack.c.l.b16 %v1255
        %v1668 = vunpack.c.l.b16 %v1256
        %v1669 = vunpack.c.l.b16 %v1257
        %v1670 = vunpack.c.l.b16 %v1258
        %v1671 = vunpack.c.l.b16 %v1259
        %v1672 = vunpack.c.l.b16 %v1260
        %v1673 = vunpack.c.l.b16 %v1261
        %v1674 = vunpack.c.l.b16 %v1262
        %v1675 = vunpack.c.l.b16 %v1263
        %v1676 = vunpack.c.l.b16 %v1264
        %v1677 = vunpack.c.l.b16 %v1265
        %v1678 = vunpack.c.l.b16 %v1266
        %v1679 = vunpack.c.l.b16 %v1267
        %v1680 = vunpack.c.l.b16 %v1268
        %v1681 = vunpack.c.l.b16 %v1269
        %v1682 = vunpack.c.l.b16 %v1270
        %v1683 = vunpack.c.l.b16 %v1271
        %v1684 = vunpack.c.l.b16 %v1272
        %v1685 = vunpack.c.l.b16 %v1273
        %v1686 = vunpack.c.l.b16 %v1274
        %v1687 = vunpack.c.l.b16 %v1275
        %v1688 = vunpack.c.l.b16 %v1276
        %v1689 = vunpack.c.l.b16 %v1277
        %v1690 = vunpack.c.l.b16 %v1278
        %v1691 = vunpack.c.l.b16 %v1279
        %v1692 = vunpack.c.l.b16 %v1280
        %v1693 = vunpack.c.l.b16 %v1281
        %v1694 = vunpack.c.l.b16 %v1282
        %v1695 = vunpack.c.l.b16 %v1283
        %v1696 = vunpack.c.l.b16 %v1284
        %v1697 = vunpack.c.l.b16 %v1285
        %v1698 = vunpack.c.l.b16 %v1286
        %v1699 = vunpack.c.l.b16 %v1287
        %v1700 = vunpack.c.l.b16 %v1288
        %v1701 = vunpack.c.l.b16 %v1289
        %v1702 = vunpack.c.l.b16 %v1290
        %v1703 = vunpack.c.l.b16 %v1291
        %v1704 = vunpack.c.l.b16 %v1292
        %v1705 = vunpack.c.l.b16 %v1293
        %v1706 = vunpack.c.l.b16 %v1294
        %v1707 = vunpack.c.l.b16 %v1295
        %v1708 = vunpack.c.l.b16 %v1296
        %v1709 = vunpack.c.l.b16 %v1297
        %v1710 = vunpack.c.l.b16 %v1298
        %v1711 = vunpack.c.l.b16 %v1299
        %v1712 = vunpack.c.l.b16 %v1300
        %v1713 = vunpack.c.l.b16 %v1301
        %v1714 = vunpack.c.l.b16 %v1302
        %v1715 = vunpack.c.l.b16 %v1303
        %v1716 = vunpack.c.l.b16 %v1304
        %v1717 = vunpack.c.l.b16 %v1305
        %v1718 = vunpack.c.l.b16 %v1306
        %v1719 = vunpack.c.l.b16 %v1307
        %v1720 = vunpack.c.l.b16 %v1308
        %v1721 = vunpack.c.l.b16 %v1309
        %v1722 = vunpack.c.l.b16 %v1310
        %v1723 = vunpack.c.l.b16 %v1311
        %v1724 = vunpack.c.l.b16 %v1312
        %v1725 = vunpack.c.l.b16 %v1313
        %v1726 = vunpack.c.l.b16 %v1314
        %v1727 = vunpack.c.l.b16 %v1315
        %v1728 = vunpack.c.l.b16 %v1316
        %v1729 = vunpack.c.l.b16 %v1317
        %v1730 = vunpack.c.l.b16 %v1318
        %v1731 = vunpack.c.l.b16 %v1319
        %v1732 = vunpack.c.l.b16 %v1320
        %v1733 = vunpack.c.l.b16 %v1321
        %v1734 = vunpack.c.l.b16 %v1322
        %v1735 = vunpack.c.l.b16 %v1323
        %v1736 = vunpack.c.l.b16 %v1324
        %v1737 = vunpack.c.l.b16 %v1325
        %v1738 = vunpack.c.l.b16 %v1326
        %v1739 = vunpack.c.l.b16 %v1327
        %v1740 = vunpack.c.l.b16 %v1328
        %v1741 = vunpack.c.l.b16 %v1329
        %v1742 = vunpack.c.l.b16 %v1330
        %v1743 = vunpack.c.l.b16 %v1331
        %v1744 = vunpack.c.l.b16 %v1332
        %v1745 = vunpack.c.l.b16 %v1333
        %v1746 = vunpack.c.l.b16 %v1334
        %v1747 = vunpack.c.l.b16 %v1335
        %v1748 = vunpack.c.l.b16 %v1336
        %v1749 = vunpack.c.l.b16 %v1337
        %v1750 = vunpack.c.l.b16 %v1338
        %v1751 = vunpack.c.l.b16 %v1339
        %v1752 = vunpack.c.l.b16 %v1340
        %v1753 = vunpack.c.l.b16 %v1341
        %v1754 = vunpack.c.l.b16 %v1342
        %v1755 = vunpack.c.l.b16 %v1343
        %v1756 = vunpack.c.l.b16 %v1344
        %v1757 = vunpack.c.l.b16 %v1345
        %v1758 = vunpack.c.l.b16 %v1346
        %v1759 = vunpack.c.l.b16 %v1347
        %v1760 = vunpack.c.l.b16 %v1348
        %v1761 = vunpack.c.l.b16 %v1349
        %v1762 = vunpack.c.l.b16 %v1350
        %v1763 = vunpack.c.l.b16 %v1351
        %v1764 = vunpack.c.l.b16 %v1352
        %v1765 = vunpack.c.l.b16 %v1353
        %v1766 = vunpack.c.l.b16 %v1354
        %v1767 = vunpack.c.l.b16 %v1355
        %v1768 = vunpack.c.l.b16 %v1356
        %v1769 = vunpack.c.l.b16 %v1357
        %v1770 = vunpack.c.l.b16 %v1358
        %v1771 = vunpack.c.l.b16 %v1359
        %v1772 = vunpack.c.l.b16 %v1360
        %v1773 = vunpack.c.l.b16 %v1361
        %v1774 = vunpack.c.l.b16 %v1362
        %v1775 = vunpack.c.l.b16 %v1363
        %v1776 = vunpack.c.l.b16 %v1364
        %v1777 = vunpack.c.l.b16 %v1365
        %v1778 = vunpack.c.l.b16 %v1366
        %v1779 = vunpack.c.l.b16 %v1367
        %v1780 = vunpack.c.l.b16 %v1368
        %v1781 = vunpack.c.l.b16 %v1369
        %v1782 = vunpack.c.l.b16 %v1370
        %v1783 = vunpack.c.l.b16 %v1371
        %v1784 = vunpack.c.l.b16 %v1372
        %v1785 = vunpack.c.l.b16 %v1373
        %v1786 = vunpack.c.l.b16 %v1374
        %v1787 = vunpack.c.l.b16 %v1375
        %v1788 = vunpack.c.l.b16 %v1376
        %v1789 = vunpack.c.l.b16 %v1377
        %v1790 = vunpack.c.l.b16 %v1378
        %v1791 = vpack.c.b16 %v1632, %v1631
        %v1792 = vpack.c.b16 %v1634, %v1633
        %v1793 = vpack.c.b16 %v1636, %v1635
        %v1794 = vpack.c.b16 %v1638, %v1637
        %v1795 = vpack.c.b16 %v1640, %v1639
        %v1796 = vpack.c.b16 %v1642, %v1641
        %v1797 = vpack.c.b16 %v1644, %v1643
        %v1798 = vpack.c.b16 %v1646, %v1645
        %v1799 = vpack.c.b16 %v1648, %v1647
        %v1800 = vpack.c.b16 %v1650, %v1649
        %v1801 = vpack.c.b16 %v1652, %v1651
        %v1802 = vpack.c.b16 %v1654, %v1653
        %v1803 = vpack.c.b16 %v1656, %v1655
        %v1804 = vpack.c.b16 %v1658, %v1657
        %v1805 = vpack.c.b16 %v1660, %v1659
        %v1806 = vpack.c.b16 %v1662, %v1661
        %v1807 = vpack.c.b16 %v1664, %v1663
        %v1808 = vpack.c.b16 %v1666, %v1665
        %v1809 = vpack.c.b16 %v1668, %v1667
        %v1810 = vpack.c.b16 %v1670, %v1669
        %v1811 = vpack.c.b16 %v1672, %v1671
        %v1812 = vpack.c.b16 %v1674, %v1673
        %v1813 = vpack.c.b16 %v1676, %v1675
        %v1814 = vpack.c.b16 %v1678, %v1677
        %v1815 = vpack.c.b16 %v1680, %v1679
        %v1816 = vpack.c.b16 %v1682, %v1681
        %v1817 = vpack.c.b16 %v1684, %v1683
        %v1818 = vpack.c.b16 %v1686, %v1685
        %v1819 = vpack.c.b16 %v1688, %v1687
        %v1820 = vpack.c.b16 %v1690, %v1689
        %v1821 = vpack.c.b16 %v1692, %v1691
        %v1822 = vpack.c.b16 %v1694, %v1693
        %v1823 = vpack.c.b16 %v1696, %v1695
        %v1824 = vpack.c.b16 %v1698, %v1697
        %v1825 = vpack.c.b16 %v1700, %v1699
        %v1826 = vpack.c.b16 %v1702, %v1701
        %v1827 = vpack.c.b16 %v1704, %v1703
        %v1828 = vpack.c.b16 %v1706, %v1705
        %v1829 = vpack.c.b16 %v1708, %v1707
        %v1830 = vpack.c.b16 %v1710, %v1709
        %v1831 = vpack.c.b16 %v1712, %v1711
        %v1832 = vpack.c.b16 %v1714, %v1713
        %v1833 = vpack.c.b16 %v1716, %v1715
        %v1834 = vpack.c.b16 %v1718, %v1717
        %v1835 = vpack.c.b16 %v1720, %v1719
        %v1836 = vpack.c.b16 %v1722, %v1721
        %v1837 = vpack.c.b16 %v1724, %v1723
        %v1838 = vpack.c.b16 %v1726, %v1725
        %v1839 = vpack.c.b16 %v1728, %v1727
        %v1840 = vpack.c.b16 %v1730, %v1729
        %v1841 = vpack.c.b16 %v1732, %v1731
        %v1842 = vpack.c.b16 %v1734, %v1733
        %v1843 = vpack.c.b16 %v1736, %v1735
        %v1844 = vpack.c.b16 %v1738, %v1737
        %v1845 = vpack.c.b16 %v1740, %v1739
        %v1846 = vpack.c.b16 %v1742, %v1741
        %v1847 = vpack.c.b16 %v1744, %v1743
        %v1848 = vpack.c.b16 %v1746, %v1745
        %v1849 = vpack.c.b16 %v1748, %v1747
        %v1850 = vpack.c.b16 %v1750, %v1749
        %v1851 = vpack.c.b16 %v1752, %v1751
        %v1852 = vpack.c.b16 %v1754, %v1753
        %v1853 = vpack.c.b16 %v1756, %v1755
        %v1854 = vpack.c.b16 %v1758, %v1757
        %v1855 = vpack.c.b16 %v1760, %v1759
        %v1856 = vpack.c.b16 %v1762, %v1761
        %v1857 = vpack.c.b16 %v1764, %v1763
        %v1858 = vpack.c.b16 %v1766, %v1765
        %v1859 = vpack.c.b16 %v1768, %v1767
        %v1860 = vpack.c.b16 %v1770, %v1769
        %v1861 = vpack.c.b16 %v1772, %v1771
        %v1862 = vpack.c.b16 %v1774, %v1773
        %v1863 = vpack.c.b16 %v1776, %v1775
        %v1864 = vpack.c.b16 %v1778, %v1777
        %v1865 = vpack.c.b16 %v1780, %v1779
        %v1866 = vpack.c.b16 %v1782, %v1781
        %v1867 = vpack.c.b16 %v1784, %v1783
        %v1868 = vpack.c.b16 %v1786, %v1785
        %v1869 = vpack.c.b16 %v1788, %v1787
        %v1870 = vpack.c.b16 %v1790, %v1789
        %1951 = vmatprep.subr.bf16.mxu0 0
        %1952 = vmatpush1.bf16.msra.mxu0 %v1791
        %1953 = vmatprep.subr.bf16.mxu0 0
        %1954 = vmatpush1.bf16.msra.mxu0 %v1792
        %1955 = vmatprep.subr.bf16.mxu0 0
        %1956 = vmatpush1.bf16.msra.mxu0 %v1793
        %1957 = vmatprep.subr.bf16.mxu0 0
        %1958 = vmatpush1.bf16.msra.mxu0 %v1794
        %1959 = vmatprep.subr.bf16.mxu0 0
        %1960 = vmatpush1.bf16.msra.mxu0 %v1795
        %1961 = vmatprep.subr.bf16.mxu0 0
        %1962 = vmatpush1.bf16.msra.mxu0 %v1796
        %1963 = vmatprep.subr.bf16.mxu0 0
        %1964 = vmatpush1.bf16.msra.mxu0 %v1797
        %1965 = vmatprep.subr.bf16.mxu0 0
        %1966 = vmatpush1.bf16.msra.mxu0 %v1798
        %1967 = vmatprep.subr.bf16.mxu0 0
        %1968 = vmatpush1.bf16.msra.mxu0 %v1799
        %1969 = vmatprep.subr.bf16.mxu0 0
        %1970 = vmatpush1.bf16.msra.mxu0 %v1800
        %1971 = vmatprep.subr.bf16.mxu0 0
        %1972 = vmatpush1.bf16.msra.mxu0 %v1801
        %1973 = vmatprep.subr.bf16.mxu0 0
        %1974 = vmatpush1.bf16.msra.mxu0 %v1802
        %1975 = vmatprep.subr.bf16.mxu0 0
        %1976 = vmatpush1.bf16.msra.mxu0 %v1803
        %1977 = vmatprep.subr.bf16.mxu0 0
        %1978 = vmatpush1.bf16.msra.mxu0 %v1804
        %1979 = vmatprep.subr.bf16.mxu0 0
        %1980 = vmatpush1.bf16.msra.mxu0 %v1805
        %1981 = vmatprep.subr.bf16.mxu0 0
        %1982 = vmatpush1.bf16.msra.mxu0 %v1806
        %1983 = vmatprep.mubr.bf16.mxu0 %v1432
        %1984 = vmatmul.mubr.bf16.gmra.mrb[0].mxu0 %v1431
        %v1985 = vpop.f32.mrb[0].mxu0
        %v1986 = vadd.f32 %v1384, %v1985
        %v1987 = vpop.f32.mrb[0].mxu0
        %v1988 = vpop.f32.mrb[0].mxu0
        %v1989 = vadd.f32 %v1384, %v1988
        %v1990 = vpop.f32.mrb[0].mxu0
        %1991 = vmatprep.mubr.bf16.mxu0 %v1442
        %1992 = vmatmul.mubr.bf16.gmra.mrb[0].mxu0 %v1441
        %v1993 = vpop.f32.mrb[0].mxu0
        %v1994 = vadd.f32 %v1384, %v1993
        %v1995 = vpop.f32.mrb[0].mxu0
        %v1996 = vpop.f32.mrb[0].mxu0
        %v1997 = vpop.f32.mrb[0].mxu0
        %1998 = vdwg.mxu0
        %1999 = vmatprep.subr.bf16.mxu0 0
        %2000 = vmatpush1.bf16.msra.mxu0 %v1807
        %2001 = vmatprep.subr.bf16.mxu0 0
        %2002 = vmatpush1.bf16.msra.mxu0 %v1808
        %2003 = vmatprep.subr.bf16.mxu0 0
        %2004 = vmatpush1.bf16.msra.mxu0 %v1809
        %2005 = vmatprep.subr.bf16.mxu0 0
        %2006 = vmatpush1.bf16.msra.mxu0 %v1810
        %2007 = vmatprep.subr.bf16.mxu0 0
        %2008 = vmatpush1.bf16.msra.mxu0 %v1811
        %2009 = vmatprep.subr.bf16.mxu0 0
        %2010 = vmatpush1.bf16.msra.mxu0 %v1812
        %2011 = vmatprep.subr.bf16.mxu0 0
        %2012 = vmatpush1.bf16.msra.mxu0 %v1813
        %2013 = vmatprep.subr.bf16.mxu0 0
        %2014 = vmatpush1.bf16.msra.mxu0 %v1814
        %2015 = vmatprep.subr.bf16.mxu0 0
        %2016 = vmatpush1.bf16.msra.mxu0 %v1815
        %2017 = vmatprep.subr.bf16.mxu0 0
        %2018 = vmatpush1.bf16.msra.mxu0 %v1816
        %2019 = vmatprep.subr.bf16.mxu0 0
        %2020 = vmatpush1.bf16.msra.mxu0 %v1817
        %2021 = vmatprep.subr.bf16.mxu0 0
        %2022 = vmatpush1.bf16.msra.mxu0 %v1818
        %2023 = vmatprep.subr.bf16.mxu0 0
        %2024 = vmatpush1.bf16.msra.mxu0 %v1819
        %2025 = vmatprep.subr.bf16.mxu0 0
        %2026 = vmatpush1.bf16.msra.mxu0 %v1820
        %2027 = vmatprep.subr.bf16.mxu0 0
        %2028 = vmatpush1.bf16.msra.mxu0 %v1821
        %2029 = vmatprep.subr.bf16.mxu0 0
        %2030 = vmatpush1.bf16.msra.mxu0 %v1822
        %2031 = vmatprep.mubr.bf16.mxu0 %v1434
        %2032 = vmatmul.mubr.bf16.gmra.mrb[0].mxu0 %v1433
        %v2033 = vpop.f32.mrb[0].mxu0
        %v2034 = vadd.f32 %v1986, %v2033
        %v2035 = vpop.f32.mrb[0].mxu0
        %v2036 = vpop.f32.mrb[0].mxu0
        %v2037 = vadd.f32 %v1989, %v2036
        %v2038 = vpop.f32.mrb[0].mxu0
        %2039 = vmatprep.mubr.bf16.mxu0 %v1444
        %2040 = vmatmul.mubr.bf16.gmra.mrb[0].mxu0 %v1443
        %v2041 = vpop.f32.mrb[0].mxu0
        %v2042 = vadd.f32 %v1994, %v2041
        %v2043 = vpop.f32.mrb[0].mxu0
        %v2044 = vpop.f32.mrb[0].mxu0
        %v2045 = vpop.f32.mrb[0].mxu0
        %2046 = vdwg.mxu0
        %2047 = vmatprep.subr.bf16.mxu0 0
        %2048 = vmatpush1.bf16.msra.mxu0 %v1823
        %2049 = vmatprep.subr.bf16.mxu0 0
        %2050 = vmatpush1.bf16.msra.mxu0 %v1824
        %2051 = vmatprep.subr.bf16.mxu0 0
        %2052 = vmatpush1.bf16.msra.mxu0 %v1825
        %2053 = vmatprep.subr.bf16.mxu0 0
        %2054 = vmatpush1.bf16.msra.mxu0 %v1826
        %2055 = vmatprep.subr.bf16.mxu0 0
        %2056 = vmatpush1.bf16.msra.mxu0 %v1827
        %2057 = vmatprep.subr.bf16.mxu0 0
        %2058 = vmatpush1.bf16.msra.mxu0 %v1828
        %2059 = vmatprep.subr.bf16.mxu0 0
        %2060 = vmatpush1.bf16.msra.mxu0 %v1829
        %2061 = vmatprep.subr.bf16.mxu0 0
        %2062 = vmatpush1.bf16.msra.mxu0 %v1830
        %2063 = vmatprep.subr.bf16.mxu0 0
        %2064 = vmatpush1.bf16.msra.mxu0 %v1831
        %2065 = vmatprep.subr.bf16.mxu0 0
        %2066 = vmatpush1.bf16.msra.mxu0 %v1832
        %2067 = vmatprep.subr.bf16.mxu0 0
        %2068 = vmatpush1.bf16.msra.mxu0 %v1833
        %2069 = vmatprep.subr.bf16.mxu0 0
        %2070 = vmatpush1.bf16.msra.mxu0 %v1834
        %2071 = vmatprep.subr.bf16.mxu0 0
        %2072 = vmatpush1.bf16.msra.mxu0 %v1835
        %2073 = vmatprep.subr.bf16.mxu0 0
        %2074 = vmatpush1.bf16.msra.mxu0 %v1836
        %2075 = vmatprep.subr.bf16.mxu0 0
        %2076 = vmatpush1.bf16.msra.mxu0 %v1837
        %2077 = vmatprep.subr.bf16.mxu0 0
        %2078 = vmatpush1.bf16.msra.mxu0 %v1838
        %2079 = vmatprep.mubr.bf16.mxu0 %v1436
        %2080 = vmatmul.mubr.bf16.gmra.mrb[0].mxu0 %v1435
        %v2081 = vpop.f32.mrb[0].mxu0
        %v2082 = vadd.f32 %v2034, %v2081
        %v2083 = vpop.f32.mrb[0].mxu0
        %v2084 = vpop.f32.mrb[0].mxu0
        %v2085 = vadd.f32 %v2037, %v2084
        %v2086 = vpop.f32.mrb[0].mxu0
        %2087 = vmatprep.mubr.bf16.mxu0 %v1446
        %2088 = vmatmul.mubr.bf16.gmra.mrb[0].mxu0 %v1445
        %v2089 = vpop.f32.mrb[0].mxu0
        %v2090 = vadd.f32 %v2042, %v2089
        %v2091 = vpop.f32.mrb[0].mxu0
        %v2092 = vpop.f32.mrb[0].mxu0
        %v2093 = vpop.f32.mrb[0].mxu0
        %2094 = vdwg.mxu0
        %2095 = vmatprep.subr.bf16.mxu0 0
        %2096 = vmatpush1.bf16.msra.mxu0 %v1839
        %2097 = vmatprep.subr.bf16.mxu0 0
        %2098 = vmatpush1.bf16.msra.mxu0 %v1840
        %2099 = vmatprep.subr.bf16.mxu0 0
        %2100 = vmatpush1.bf16.msra.mxu0 %v1841
        %2101 = vmatprep.subr.bf16.mxu0 0
        %2102 = vmatpush1.bf16.msra.mxu0 %v1842
        %2103 = vmatprep.subr.bf16.mxu0 0
        %2104 = vmatpush1.bf16.msra.mxu0 %v1843
        %2105 = vmatprep.subr.bf16.mxu0 0
        %2106 = vmatpush1.bf16.msra.mxu0 %v1844
        %2107 = vmatprep.subr.bf16.mxu0 0
        %2108 = vmatpush1.bf16.msra.mxu0 %v1845
        %2109 = vmatprep.subr.bf16.mxu0 0
        %2110 = vmatpush1.bf16.msra.mxu0 %v1846
        %2111 = vmatprep.subr.bf16.mxu0 0
        %2112 = vmatpush1.bf16.msra.mxu0 %v1847
        %2113 = vmatprep.subr.bf16.mxu0 0
        %2114 = vmatpush1.bf16.msra.mxu0 %v1848
        %2115 = vmatprep.subr.bf16.mxu0 0
        %2116 = vmatpush1.bf16.msra.mxu0 %v1849
        %2117 = vmatprep.subr.bf16.mxu0 0
        %2118 = vmatpush1.bf16.msra.mxu0 %v1850
        %2119 = vmatprep.subr.bf16.mxu0 0
        %2120 = vmatpush1.bf16.msra.mxu0 %v1851
        %2121 = vmatprep.subr.bf16.mxu0 0
        %2122 = vmatpush1.bf16.msra.mxu0 %v1852
        %2123 = vmatprep.subr.bf16.mxu0 0
        %2124 = vmatpush1.bf16.msra.mxu0 %v1853
        %2125 = vmatprep.subr.bf16.mxu0 0
        %2126 = vmatpush1.bf16.msra.mxu0 %v1854
        %2127 = vmatprep.mubr.bf16.mxu0 %v1438
        %2128 = vmatmul.mubr.bf16.gmra.mrb[0].mxu0 %v1437
        %v2129 = vpop.f32.mrb[0].mxu0
        %v2130 = vadd.f32 %v2082, %v2129
        %v2131 = vpop.f32.mrb[0].mxu0
        %v2132 = vpop.f32.mrb[0].mxu0
        %v2133 = vadd.f32 %v2085, %v2132
        %v2134 = vpop.f32.mrb[0].mxu0
        %2135 = vmatprep.mubr.bf16.mxu0 %v1448
        %2136 = vmatmul.mubr.bf16.gmra.mrb[0].mxu0 %v1447
        %v2137 = vpop.f32.mrb[0].mxu0
        %v2138 = vadd.f32 %v2090, %v2137
        %v2139 = vpop.f32.mrb[0].mxu0
        %v2140 = vpop.f32.mrb[0].mxu0
        %v2141 = vpop.f32.mrb[0].mxu0
        %2142 = vdwg.mxu0
        %2143 = vmatprep.subr.bf16.mxu0 0
        %2144 = vmatpush1.bf16.msra.mxu0 %v1855
        %2145 = vmatprep.subr.bf16.mxu0 0
        %2146 = vmatpush1.bf16.msra.mxu0 %v1856
        %2147 = vmatprep.subr.bf16.mxu0 0
        %2148 = vmatpush1.bf16.msra.mxu0 %v1857
        %2149 = vmatprep.subr.bf16.mxu0 0
        %2150 = vmatpush1.bf16.msra.mxu0 %v1858
        %2151 = vmatprep.subr.bf16.mxu0 0
        %2152 = vmatpush1.bf16.msra.mxu0 %v1859
        %2153 = vmatprep.subr.bf16.mxu0 0
        %2154 = vmatpush1.bf16.msra.mxu0 %v1860
        %2155 = vmatprep.subr.bf16.mxu0 0
        %2156 = vmatpush1.bf16.msra.mxu0 %v1861
        %2157 = vmatprep.subr.bf16.mxu0 0
        %2158 = vmatpush1.bf16.msra.mxu0 %v1862
        %2159 = vmatprep.subr.bf16.mxu0 0
        %2160 = vmatpush1.bf16.msra.mxu0 %v1863
        %2161 = vmatprep.subr.bf16.mxu0 0
        %2162 = vmatpush1.bf16.msra.mxu0 %v1864
        %2163 = vmatprep.subr.bf16.mxu0 0
        %2164 = vmatpush1.bf16.msra.mxu0 %v1865
        %2165 = vmatprep.subr.bf16.mxu0 0
        %2166 = vmatpush1.bf16.msra.mxu0 %v1866
        %2167 = vmatprep.subr.bf16.mxu0 0
        %2168 = vmatpush1.bf16.msra.mxu0 %v1867
        %2169 = vmatprep.subr.bf16.mxu0 0
        %2170 = vmatpush1.bf16.msra.mxu0 %v1868
        %2171 = vmatprep.subr.bf16.mxu0 0
        %2172 = vmatpush1.bf16.msra.mxu0 %v1869
        %2173 = vmatprep.subr.bf16.mxu0 0
        %2174 = vmatpush1.bf16.msra.mxu0 %v1870
        %2175 = vmatprep.mubr.bf16.mxu0 %v1440
        %2176 = vmatmul.mubr.bf16.gmra.mrb[0].mxu0 %v1439
        %v2177 = vpop.f32.mrb[0].mxu0
        %v2178 = vadd.f32 %v2130, %v2177
        %v2179 = vpop.f32.mrb[0].mxu0
        %v2180 = vpop.f32.mrb[0].mxu0
        %v2181 = vadd.f32 %v2133, %v2180
        %v2182 = vpop.f32.mrb[0].mxu0
        %2183 = vmatprep.mubr.bf16.mxu0 %v1450
        %2184 = vmatmul.mubr.bf16.gmra.mrb[0].mxu0 %v1449
        %v2185 = vpop.f32.mrb[0].mxu0
        %v2186 = vadd.f32 %v2138, %v2185
        %v2187 = vpop.f32.mrb[0].mxu0
        %v2188 = vpop.f32.mrb[0].mxu0
        %v2189 = vpop.f32.mrb[0].mxu0
        %2190 = vdwg.mxu0
        %v2191 = vmax.f32 %v2178, 0.0
        %v2192 = vmax.f32 %v2181, 0.0
        %v2193 = vmax.f32 %v2186, 0.0
        %v2194 = vld [vmem:[%s5] sm:$0x1]
        %s2195 = sld [smem:[#allocation6]]
        %v2196 = vstv %s2195
        %2197 = vmatprep.subr.mxu0 0.0
        %2198 = vmatpush1.xpose.msra.mxu0 %v2191
        %2199 = vmatprep.subr.mxu0 0.0
        %2200 = vmatpush1.xpose.msra.mxu0 %v2192
        %2201 = vmatprep.subr.mxu0 0.0
        %2202 = vmatpush1.xpose.msra.mxu0 %v2193
        %2203 = vmatprep.subr.mxu0 0.0
        %2204 = vmatpush1.xpose.msra.mxu0 0.0
        %2205 = vmatprep.subr.mxu0 0.0
        %2206 = vmatpush1.xpose.msra.mxu0 0.0
        %2207 = vmatprep.subr.mxu0 0.0
        %2208 = vmatpush1.xpose.msra.mxu0 0.0
        %2209 = vmatprep.subr.mxu0 0.0
        %2210 = vmatpush1.xpose.msra.mxu0 0.0
        %2211 = vmatprep.subr.mxu0 0.0
        %2212 = vmatpush1.xpose.msra.mxu0 0.0
        %2213 = vmatprep.subr.mxu0 0.0
        %2214 = vmatpush1.xpose.msra.mxu0 0.0
        %2215 = vmatprep.subr.mxu0 0.0
        %2216 = vmatpush1.xpose.msra.mxu0 0.0
        %2217 = vmatprep.subr.mxu0 0.0
        %2218 = vmatpush1.xpose.msra.mxu0 0.0
        %2219 = vmatprep.subr.mxu0 0.0
        %2220 = vmatpush1.xpose.msra.mxu0 0.0
        %2221 = vmatprep.subr.mxu0 0.0
        %2222 = vmatpush1.xpose.msra.mxu0 0.0
        %2223 = vmatprep.subr.mxu0 0.0
        %2224 = vmatpush1.xpose.msra.mxu0 0.0
        %2225 = vmatprep.subr.mxu0 0.0
        %2226 = vmatpush1.xpose.msra.mxu0 0.0
        %2227 = vmatprep.subr.mxu0 0.0
        %2228 = vmatpush1.xpose.msra.mxu0 0.0
        %2229 = vmatprep.subr.mxu0 0.0
        %2230 = vmatpush1.xpose.msra.mxu0 0.0
        %2231 = vmatprep.subr.mxu0 0.0
        %2232 = vmatpush1.xpose.msra.mxu0 0.0
        %2233 = vmatprep.subr.mxu0 0.0
        %2234 = vmatpush1.xpose.msra.mxu0 0.0
        %2235 = vmatprep.subr.mxu0 0.0
        %2236 = vmatpush1.xpose.msra.mxu0 0.0
        %2237 = vmatprep.subr.mxu0 0.0
        %2238 = vmatpush1.xpose.msra.mxu0 0.0
        %2239 = vmatprep.subr.mxu0 0.0
        %2240 = vmatpush1.xpose.msra.mxu0 0.0
        %2241 = vmatprep.subr.mxu0 0.0
        %2242 = vmatpush1.xpose.msra.mxu0 0.0
        %2243 = vmatprep.subr.mxu0 0.0
        %2244 = vmatpush1.xpose.msra.mxu0 0.0
        %2245 = vmatprep.subr.mxu0 0.0
        %2246 = vmatpush1.xpose.msra.mxu0 0.0
        %2247 = vmatprep.subr.mxu0 0.0
        %2248 = vmatpush1.xpose.msra.mxu0 0.0
        %2249 = vmatprep.subr.mxu0 0.0
        %2250 = vmatpush1.xpose.msra.mxu0 0.0
        %2251 = vmatprep.subr.mxu0 0.0
        %2252 = vmatpush1.xpose.msra.mxu0 0.0
        %2253 = vmatprep.subr.mxu0 0.0
        %2254 = vmatpush1.xpose.msra.mxu0 0.0
        %2255 = vmatprep.subr.mxu0 0.0
        %2256 = vmatpush1.xpose.msra.mxu0 0.0
        %2257 = vmatprep.subr.mxu0 0.0
        %2258 = vmatpush1.xpose.msra.mxu0 0.0
        %2259 = vmatprep.subr.mxu0 0.0
        %2260 = vmatpush1.xpose.msra.mxu0 0.0
        %2261 = vmatprep.mubr.f32.mxu0 0.0
        %2262 = vmatmul.mubr.f32.gmra.mrb[0].mxu0 %v2194
        %v2263 = vpop.f32.mrb[0].mxu0
        %v2264 = vadd.f32 %v2196, %v2263
        %v2265 = vpop.f32.mrb[0].mxu0
        %2266 = vdwg.mxu0
        %vm2267 = vcmask 155648
        %2268 = vst.msk [vmem:[%s325] sm:$0x1] %vm2267, %v2264
        %s2269 = sand.u32 %s186, 1
        %s2270 = scalar_lea.sflag [#allocation9], %s2269
        %s2271 = sand.u32 %s186, 1
        %s2272 = scalar_lea.vmem [#allocation13], %s2271
        // Predicated region
        $region61: #{tpu_custom_call.1} parent=47 // pred_check
          %p2273 = pneg %p196
        $region62: #{tpu_custom_call.1} parent=47 // pred_check_branch
          %2275 = sbr.rel (%p2273) target = $region64
        $region63: #{tpu_custom_call.1} parent=47 // pred_region
          %s2277 = ssub.s32 16, 16
          %2278 = vsyncadd %s2270, %s2277
          %s2279 = smul.addr %s26, 16
          %s2280 = scalar_lea.hbm %s7, %s2279
          %s2282 = sshll.u32 %s2272, 4
          %s2283 = int_to_ptr.vmem [resolvable:$true] %s2282
          %2285 = dma.vmem_to_hbm [thread:$0]  %s2283, 16, %s2280, %s2270
        $region64: #{tpu_custom_call.1} parent=47 // pred_fallthru
          _
      $region48: #{tpu_custom_call.1} parent=5 // pred_fallthru
        _
      %p2286 = scmp.le.s32.totalorder 2, %s21
      // Predicated region
      $region65: #{tpu_custom_call.1} parent=5 // pred_check
        %p2287 = pneg %p2286
      $region66: #{tpu_custom_call.1} parent=5 // pred_check_branch
        %2289 = sbr.rel (%p2287) target = $region68
      $region67: #{tpu_custom_call.1} parent=5 // pred_region
        %s2290 = ssub.s32 %s21, 2
        // Predicated region
        $region69: #{tpu_custom_call.1} parent=67 // pred_check
          %p2291 = pneg %p202
        $region70: #{tpu_custom_call.1} parent=67 // pred_check_branch
          %2293 = sbr.rel (%p2291) target = $region72
        $region71: #{tpu_custom_call.1} parent=67 // pred_region
          %s2294 = sand.u32 %s187, 1
          %s2295 = scalar_lea.sflag [#allocation9], %s2294
          %s2296 = sand.u32 %s187, 1
          %s2297 = scalar_lea.vmem [#allocation13], %s2296
          %2298 = dma.done %s2295, 16
        $region72: #{tpu_custom_call.1} parent=67 // pred_fallthru
          _
      $region68: #{tpu_custom_call.1} parent=5 // pred_fallthru
        _
    $region6: #{tpu_custom_call.1} parent=1 // loop_footer
      %s25 = sadd.s32 1, %s21
    $region7: #{tpu_custom_call.1} parent=1 // loop_footer_branch
      %20 = sbr.rel target = $region3
    $region8: #{tpu_custom_call.1} parent=1 // loop_exit
      _
    %2299 = vsyncpa [#allocation8], 1
    %s2300 = scalar_lea.sflag [#allocation8], 1
    %2301 = vsyncpa %s2300, 1
    %2302 = vsyncpa [#allocation11], 1
    %2303 = vsyncpa [#allocation9], 1
    %s2304 = scalar_lea.sflag [#allocation9], 1
    %2305 = vsyncpa %s2304, 1

</llo_original>
